<compile_context>
chip_gen: v7x
topology: tpu7x:2x2x1
jax: 0.10.0
libtpu: 0.0.40
codegen_flags: <defaults>
</compile_context>

<pallas_src>
import math

import jax
import jax.numpy as jnp
from jax import lax
from jax.experimental import pallas as pl
from jax.experimental.pallas import tpu as pltpu

# ----------------------- small synthetic GPT-2 config -----------------------
N_LAYER = 2
N_HEAD = 4
N_EMBD = 32
HEAD_DIM = N_EMBD // N_HEAD
VOCAB = 64
MAX_CONTEXT = 16            # max_context_size of the stateful KV cache
BATCH = 1                   # StatefulZenz default batch_size=1
SEQ = 8
N_POS = MAX_CONTEXT + SEQ   # positions used: [MAX_CONTEXT, MAX_CONTEXT+SEQ)
LN_EPS = 1e-5


# ------------------------------ fused kernel ---------------------------------
def _fused_forward_kernel(h0_ref,
                          ln1_g, ln1_b, c_attn_w, c_attn_b, c_proj_w, c_proj_b,
                          ln2_g, ln2_b, c_fc_w, c_fc_b, mlp_w, mlp_b,
                          lnf_g, lnf_b, wte_ref,
                          logits_ref, h_ref):
    """One grid step == one transformer layer; last step also emits logits."""
    l = pl.program_id(0)
    S, E = h_ref.shape
    H, D = N_HEAD, HEAD_DIM

    @pl.when(l == 0)
    def _():
        h_ref[...] = h0_ref[...]

    def layernorm(x, g, b):
        mu = jnp.mean(x, axis=-1, keepdims=True)
        var = jnp.mean(jnp.square(x - mu), axis=-1, keepdims=True)
        return (x - mu) * lax.rsqrt(var + LN_EPS) * g + b        # rsqrt -> EUP

    h = h_ref[...]

    # ------------------------------ attention --------------------------------
    x = layernorm(h, ln1_g[...], ln1_b[...])
    qkv = jnp.dot(x, c_attn_w[...], preferred_element_type=jnp.float32) + c_attn_b[...]

    # Pre-scale ALL heads' queries with a single vector op (instead of scaling
    # every per-head score matrix).
    inv_sqrt_d = 1.0 / math.sqrt(D)
    q_all = qkv[:, 0 * E:1 * E] * inv_sqrt_d                     # (S, E)
    k_all = qkv[:, 1 * E:2 * E]                                  # (S, E)
    v_all = qkv[:, 2 * E:3 * E]                                  # (S, E)

    # Causal mask over the fresh S x S scores only.  The MAX_CONTEXT cached
    # keys are all-zero (never written in this forward path) and always
    # visible: score 0, value 0 -> handled analytically in the denominator.
    qi = lax.broadcasted_iota(jnp.int32, (S, S), 0)
    kj = lax.broadcasted_iota(jnp.int32, (S, S), 1)
    causal = kj <= qi
    neg = jnp.finfo(jnp.float32).min

    cw = c_proj_w[...]                                           # (E, E)
    # Fold the c_proj bias into the accumulator init (saves one (S,E) add).
    attn_acc = jnp.broadcast_to(c_proj_b[...], (S, E)).astype(jnp.float32)
    for hh in range(H):                                          # unrolled
        q = q_all[:, hh * D:(hh + 1) * D]                        # (S, D)
        k = k_all[:, hh * D:(hh + 1) * D]                        # (S, D)
        v = v_all[:, hh * D:(hh + 1) * D]                        # (S, D)
        s = lax.dot_general(q, k, (((1,), (1,)), ((), ())),
                            preferred_element_type=jnp.float32)  # (S, S)
        s = jnp.where(causal, s, neg)
        # include the 0-valued scores of the MAX_CONTEXT cached zero keys
        m = jnp.maximum(jnp.max(s, axis=-1, keepdims=True), 0.0)
        p = jnp.exp(s - m)                                       # exp -> EUP
        denom = jnp.sum(p, axis=-1, keepdims=True) + MAX_CONTEXT * jnp.exp(-m)
        inv_denom = 1.0 / denom                                  # (S,1): 8 divides
        o = jnp.dot(p, v, preferred_element_type=jnp.float32) * inv_denom
        # fold c_proj per head: sum_h o_h @ W_proj[h*D:(h+1)*D, :]
        attn_acc = attn_acc + jnp.dot(o, cw[hh * D:(hh + 1) * D, :],
                                      preferred_element_type=jnp.float32)
    h = h + attn_acc

    # -------------------------------- MLP ------------------------------------
    x = layernorm(h, ln2_g[...], ln2_b[...])
    x = jnp.dot(x, c_fc_w[...], preferred_element_type=jnp.float32) + c_fc_b[...]
    c = math.sqrt(2.0 / math.pi)
    x = 0.5 * x * (1.0 + jnp.tanh(c * (x + 0.044715 * x * x * x)))  # gelu_new, tanh -> EUP
    x = jnp.dot(x, mlp_w[...], preferred_element_type=jnp.float32) + mlp_b[...]
    h = h + x

    h_ref[...] = h

    # ----------------------- final LN + tied LM head --------------------------
    @pl.when(l == pl.num_programs(0) - 1)
    def _():
        hf = layernorm(h, lnf_g[...], lnf_b[...])
        # contract against wte's embedding axis directly (no wte.T copy)
        logits_ref[...] = lax.dot_general(
            hf, wte_ref[...], (((1,), (1,)), ((), ())),
            preferred_element_type=jnp.float32)


def _layer_spec(shape):
    """Layer-stacked weight: squeeze the leading layer axis, index by grid l."""
    rest = tuple(shape[1:])
    return pl.BlockSpec((None,) + rest,
                        lambda l, _n=len(rest): (l,) + (0,) * _n)


def _const_spec(shape):
    """Whole-array block, same tile every step (kept resident in VMEM)."""
    shape = tuple(shape)
    return pl.BlockSpec(shape, lambda l, _n=len(shape): (0,) * _n)


def fused_gpt2_forward(h0, params):
    """h0: (B*S, E) embedded tokens -> logits (B*S, VOCAB)."""
    BS, E = h0.shape
    p = params
    grid_spec = pltpu.PrefetchScalarGridSpec(
        num_scalar_prefetch=0,
        grid=(N_LAYER,),
        in_specs=[
            _const_spec(h0.shape),
            _layer_spec(p["ln1_g"].shape), _layer_spec(p["ln1_b"].shape),
            _layer_spec(p["c_attn_w"].shape), _layer_spec(p["c_attn_b"].shape),
            _layer_spec(p["c_proj_w"].shape), _layer_spec(p["c_proj_b"].shape),
            _layer_spec(p["ln2_g"].shape), _layer_spec(p["ln2_b"].shape),
            _layer_spec(p["c_fc_w"].shape), _layer_spec(p["c_fc_b"].shape),
            _layer_spec(p["mlp_proj_w"].shape), _layer_spec(p["mlp_proj_b"].shape),
            _const_spec(p["ln_f_g"].shape), _const_spec(p["ln_f_b"].shape),
            _const_spec(p["wte"].shape),
        ],
        out_specs=pl.BlockSpec((BS, VOCAB), lambda l: (0, 0)),
        scratch_shapes=[pltpu.VMEM((BS, E), jnp.float32)],   # residual stream
    )
    return pl.pallas_call(
        _fused_forward_kernel,
        out_shape=jax.ShapeDtypeStruct((BS, VOCAB), jnp.float32),
        grid_spec=grid_spec,
        compiler_params=pltpu.CompilerParams(
            dimension_semantics=("arbitrary",)),   # layers are sequential
    )(h0,
      p["ln1_g"], p["ln1_b"], p["c_attn_w"], p["c_attn_b"],
      p["c_proj_w"], p["c_proj_b"], p["ln2_g"], p["ln2_b"],
      p["c_fc_w"], p["c_fc_b"], p["mlp_proj_w"], p["mlp_proj_b"],
      p["ln_f_g"], p["ln_f_b"], p["wte"])


# ---------------------------- parameters / state -----------------------------
def init_params(key):
    L, E = N_LAYER, N_EMBD
    keys = jax.random.split(key, 6)

    def nrm(k, shape):
        return (0.02 * jax.random.normal(k, shape)).astype(jnp.float32)

    return {
        "wte": nrm(keys[0], (VOCAB, E)),
        "wpe": nrm(keys[1], (N_POS, E)),
        "ln_f_g": jnp.ones((1, E), jnp.float32),
        "ln_f_b": jnp.zeros((1, E), jnp.float32),
        # per-layer weights stacked along a leading layer axis
        "ln1_g": jnp.ones((L, 1, E), jnp.float32),
        "ln1_b": jnp.zeros((L, 1, E), jnp.float32),
        "c_attn_w": nrm(keys[2], (L, E, 3 * E)),
        "c_attn_b": jnp.zeros((L, 1, 3 * E), jnp.float32),
        "c_proj_w": nrm(keys[3], (L, E, E)),
        "c_proj_b": jnp.zeros((L, 1, E), jnp.float32),
        "ln2_g": jnp.ones((L, 1, E), jnp.float32),
        "ln2_b": jnp.zeros((L, 1, E), jnp.float32),
        "c_fc_w": nrm(keys[4], (L, E, 4 * E)),
        "c_fc_b": jnp.zeros((L, 1, 4 * E), jnp.float32),
        "mlp_proj_w": nrm(keys[5], (L, 4 * E, E)),
        "mlp_proj_b": jnp.zeros((L, 1, E), jnp.float32),
    }


# --------------------------------- forward -----------------------------------
def stateful_zenz_forward(params, k_cache, v_cache, input_ids, attention_mask):
    B, S = input_ids.shape
    E = N_EMBD

    # StatefulZenz bookkeeping (does not influence logits, kept for fidelity):
    _past_seen_tokens = attention_mask.shape[-1] - S
    # attention_mask is intentionally ignored: SliceUpdateGPT2Attention sets
    # attention_mask = None, so only the GPT-2 causal bias applies.
    # k_cache / v_cache are the zero-initialized stateful buffers; they are
    # never written in this forward path, so their contribution is folded
    # analytically into the softmax denominator inside the kernel.
    del k_cache, v_cache

    pos = MAX_CONTEXT + jnp.arange(S)                       # past_length offset
    h0 = (params["wte"][input_ids] + params["wpe"][pos][None, :, :]).reshape(B * S, E)

    logits = fused_gpt2_forward(h0, params)
    return logits.reshape(B, S, VOCAB)


# --------------------------- pure-JAX reference -------------------------------
def reference_forward(params, k_cache, v_cache, input_ids, attention_mask):
    """Literal GPT-2 math with the explicit zero-cache concat (for validation)."""
    B, S = input_ids.shape
    E, H, D = N_EMBD, N_HEAD, HEAD_DIM
    pos = MAX_CONTEXT + jnp.arange(S)
    h = params["wte"][input_ids] + params["wpe"][pos][None]

    def ln(x, g, b):
        mu = x.mean(-1, keepdims=True)
        var = ((x - mu) ** 2).mean(-1, keepdims=True)
        return (x - mu) / jnp.sqrt(var + LN_EPS) * g + b

    for l in range(N_LAYER):
        x = ln(h, params["ln1_g"][l, 0], params["ln1_b"][l, 0])
        qkv = x @ params["c_attn_w"][l] + params["c_attn_b"][l, 0]
        q, k, v = jnp.split(qkv, 3, axis=-1)

        def split_heads(t):
            return t.reshape(B, S, H, D).transpose(0, 2, 1, 3)

        q, k, v = split_heads(q), split_heads(k), split_heads(v)
        k = jnp.concatenate([k_cache[l], k], axis=2)
        v = jnp.concatenate([v_cache[l], v], axis=2)
        T = k.shape[2]
        s = jnp.einsum("bhqd,bhkd->bhqk", q, k) / math.sqrt(D)
        mask = jnp.arange(T)[None, :] <= jnp.arange(S)[:, None] + MAX_CONTEXT
        s = jnp.where(mask, s, jnp.finfo(jnp.float32).min)
        p = jax.nn.softmax(s, axis=-1)
        a = jnp.einsum("bhqk,bhkd->bhqd", p, v)
        a = a.transpose(0, 2, 1, 3).reshape(B, S, E)
        a = a @ params["c_proj_w"][l] + params["c_proj_b"][l, 0]
        h = h + a

        x = ln(h, params["ln2_g"][l, 0], params["ln2_b"][l, 0])
        x = x @ params["c_fc_w"][l] + params["c_fc_b"][l, 0]
        c = math.sqrt(2.0 / math.pi)
        x = 0.5 * x * (1.0 + jnp.tanh(c * (x + 0.044715 * x ** 3)))
        x = x @ params["mlp_proj_w"][l] + params["mlp_proj_b"][l, 0]
        h = h + x

    h = ln(h, params["ln_f_g"][0], params["ln_f_b"][0])
    return h @ params["wte"].T


# ----------------------------------- main -------------------------------------
if __name__ == "__main__":
    key = jax.random.PRNGKey(0)
    pkey, ikey = jax.random.split(key)
    params = init_params(pkey)

    # stateful buffers (keyCache / valueCache): all zeros, never written in this
    # forward path (cache.update is not invoked by SliceUpdateGPT2Attention).
    k_cache = jnp.zeros((N_LAYER, BATCH, N_HEAD, MAX_CONTEXT, HEAD_DIM), jnp.float32)
    v_cache = jnp.zeros_like(k_cache)

    input_ids = jax.random.randint(ikey, (BATCH, SEQ), 0, VOCAB, dtype=jnp.int32)
    attention_mask = jnp.ones((BATCH, SEQ), jnp.float32)

    logits = jax.jit(stateful_zenz_forward)(params, k_cache, v_cache,
                                            input_ids, attention_mask)
    jax.block_until_ready(logits)

    ref = reference_forward(params, k_cache, v_cache, input_ids, attention_mask)
    assert logits.shape == (BATCH, SEQ, VOCAB)
    assert bool(jnp.all(jnp.isfinite(logits)))
    assert bool(jnp.allclose(logits, ref, atol=1e-4, rtol=1e-3))
    print("KERNEL_OK")
</pallas_src>

<mosaic_0001>
module attributes {stable_mosaic.version = 11 : i64} {
  func.func @_fused_forward_kernel(%arg0: i32, %arg1: memref<8x32xf32, #tpu.memory_space<vmem>>, %arg2: memref<1x1x32xf32, #tpu.memory_space<vmem>>, %arg3: memref<1x1x32xf32, #tpu.memory_space<vmem>>, %arg4: memref<1x32x96xf32, #tpu.memory_space<vmem>>, %arg5: memref<1x1x96xf32, #tpu.memory_space<vmem>>, %arg6: memref<1x32x32xf32, #tpu.memory_space<vmem>>, %arg7: memref<1x1x32xf32, #tpu.memory_space<vmem>>, %arg8: memref<1x1x32xf32, #tpu.memory_space<vmem>>, %arg9: memref<1x1x32xf32, #tpu.memory_space<vmem>>, %arg10: memref<1x32x128xf32, #tpu.memory_space<vmem>>, %arg11: memref<1x1x128xf32, #tpu.memory_space<vmem>>, %arg12: memref<1x128x32xf32, #tpu.memory_space<vmem>>, %arg13: memref<1x1x32xf32, #tpu.memory_space<vmem>>, %arg14: memref<1x32xf32, #tpu.memory_space<vmem>>, %arg15: memref<1x32xf32, #tpu.memory_space<vmem>>, %arg16: memref<64x32xf32, #tpu.memory_space<vmem>>, %arg17: memref<8x64xf32, #tpu.memory_space<vmem>>, %arg18: memref<8x32xf32, #tpu.memory_space<vmem>>) attributes {dimension_semantics = [#tpu.dimension_semantics<arbitrary>], iteration_bounds = array<i64: 2>, scalar_prefetch = 0 : i64, scratch_operands = 1 : i64, tpu.core_type = #tpu.core_type<tc>, window_params = [{pipeline_mode = #tpu.pipeline_mode<synchronous>, transform_indices = @transform_0, window_bounds = array<i64: 8, 32>}, {transform_indices = @transform_1, window_bounds = array<i64: 1, 1, 32>}, {transform_indices = @transform_2, window_bounds = array<i64: 1, 1, 32>}, {transform_indices = @transform_3, window_bounds = array<i64: 1, 32, 96>}, {transform_indices = @transform_4, window_bounds = array<i64: 1, 1, 96>}, {transform_indices = @transform_5, window_bounds = array<i64: 1, 32, 32>}, {transform_indices = @transform_6, window_bounds = array<i64: 1, 1, 32>}, {transform_indices = @transform_7, window_bounds = array<i64: 1, 1, 32>}, {transform_indices = @transform_8, window_bounds = array<i64: 1, 1, 32>}, {transform_indices = @transform_9, window_bounds = array<i64: 1, 32, 128>}, {transform_indices = @transform_10, window_bounds = array<i64: 1, 1, 128>}, {transform_indices = @transform_11, window_bounds = array<i64: 1, 128, 32>}, {transform_indices = @transform_12, window_bounds = array<i64: 1, 1, 32>}, {pipeline_mode = #tpu.pipeline_mode<synchronous>, transform_indices = @transform_13, window_bounds = array<i64: 1, 32>}, {pipeline_mode = #tpu.pipeline_mode<synchronous>, transform_indices = @transform_14, window_bounds = array<i64: 1, 32>}, {pipeline_mode = #tpu.pipeline_mode<synchronous>, transform_indices = @transform_15, window_bounds = array<i64: 64, 32>}, {pipeline_mode = #tpu.pipeline_mode<synchronous>, transform_indices = @transform_16, window_bounds = array<i64: 8, 64>}]} {
    %c0_i32 = arith.constant 0 : i32
    %0 = arith.cmpi eq, %arg0, %c0_i32 : i32
    %1 = arith.extui %0 : i1 to i32
    %c0_i32_0 = arith.constant 0 : i32
    %2 = arith.cmpi ne, %1, %c0_i32_0 : i32
    scf.if %2 {
      %c0_98 = arith.constant 0 : index
      %c0_99 = arith.constant 0 : index
      %226 = vector.load %arg1[%c0_98, %c0_99] : memref<8x32xf32, #tpu.memory_space<vmem>>, vector<8x32xf32>
      %c0_100 = arith.constant 0 : index
      %c0_101 = arith.constant 0 : index
      %227 = vector.load %arg18[%c0_100, %c0_101] : memref<8x32xf32, #tpu.memory_space<vmem>>, vector<8x32xf32>
      tpu.vector_store %arg18[%c0_100, %c0_101], %226 {strides = array<i32>} : memref<8x32xf32, #tpu.memory_space<vmem>>, vector<8x32xf32>,
    } else {
    }
    %c0 = arith.constant 0 : index
    %c0_1 = arith.constant 0 : index
    %3 = vector.load %arg18[%c0, %c0_1] : memref<8x32xf32, #tpu.memory_space<vmem>>, vector<8x32xf32>
    %c0_2 = arith.constant 0 : index
    %c0_3 = arith.constant 0 : index
    %c0_4 = arith.constant 0 : index
    %4 = vector.load %arg2[%c0_2, %c0_3, %c0_4] : memref<1x1x32xf32, #tpu.memory_space<vmem>>, vector<1x1x32xf32>
    %5 = vector.shape_cast %4 : vector<1x1x32xf32> to vector<1x32xf32>
    %c0_5 = arith.constant 0 : index
    %c0_6 = arith.constant 0 : index
    %c0_7 = arith.constant 0 : index
    %6 = vector.load %arg3[%c0_5, %c0_6, %c0_7] : memref<1x1x32xf32, #tpu.memory_space<vmem>>, vector<1x1x32xf32>
    %7 = vector.shape_cast %6 : vector<1x1x32xf32> to vector<1x32xf32>
    %cst = arith.constant dense<0.000000e+00> : vector<8xf32>
    %8 = vector.multi_reduction <add>, %3, %cst [1] : vector<8x32xf32> to vector<8xf32>
    %9 = vector.shape_cast %8 : vector<8xf32> to vector<8x1xf32>
    %cst_8 = arith.constant 3.200000e+01 : f32
    %10 = vector.broadcast %cst_8 : f32 to vector<8x1xf32>
    %11 = arith.divf %9, %10 : vector<8x1xf32>
    %12 = vector.broadcast %11 : vector<8x1xf32> to vector<8x32xf32>
    %13 = arith.subf %3, %12 : vector<8x32xf32>
    %14 = arith.mulf %13, %13 : vector<8x32xf32>
    %cst_9 = arith.constant dense<0.000000e+00> : vector<8xf32>
    %15 = vector.multi_reduction <add>, %14, %cst_9 [1] : vector<8x32xf32> to vector<8xf32>
    %16 = vector.shape_cast %15 : vector<8xf32> to vector<8x1xf32>
    %cst_10 = arith.constant 3.200000e+01 : f32
    %17 = vector.broadcast %cst_10 : f32 to vector<8x1xf32>
    %18 = arith.divf %16, %17 : vector<8x1xf32>
    %19 = vector.broadcast %11 : vector<8x1xf32> to vector<8x32xf32>
    %20 = arith.subf %3, %19 : vector<8x32xf32>
    %cst_11 = arith.constant 9.99999974E-6 : f32
    %21 = vector.broadcast %cst_11 : f32 to vector<8x1xf32>
    %22 = arith.addf %18, %21 : vector<8x1xf32>
    %23 = math.rsqrt %22 : vector<8x1xf32>
    %24 = vector.broadcast %23 : vector<8x1xf32> to vector<8x32xf32>
    %25 = arith.mulf %20, %24 : vector<8x32xf32>
    %26 = vector.broadcast %5 : vector<1x32xf32> to vector<8x32xf32>
    %27 = arith.mulf %25, %26 : vector<8x32xf32>
    %28 = vector.broadcast %7 : vector<1x32xf32> to vector<8x32xf32>
    %29 = arith.addf %27, %28 : vector<8x32xf32>
    %c0_12 = arith.constant 0 : index
    %c0_13 = arith.constant 0 : index
    %c0_14 = arith.constant 0 : index
    %30 = vector.load %arg4[%c0_12, %c0_13, %c0_14] : memref<1x32x96xf32, #tpu.memory_space<vmem>>, vector<1x32x96xf32>
    %31 = vector.shape_cast %30 : vector<1x32x96xf32> to vector<32x96xf32>
    %cst_15 = arith.constant dense<0.000000e+00> : vector<8x96xf32>
    %32 = tpu.matmul %29, %31, %cst_15 {dimension_numbers = #tpu.dot_dimension_numbers<[1], [0], [0], [1], [0, 0, 1, 1], [], []>} : vector<8x32xf32>, vector<32x96xf32>, vector<8x96xf32> -> vector<8x96xf32>
    %c0_16 = arith.constant 0 : index
    %c0_17 = arith.constant 0 : index
    %c0_18 = arith.constant 0 : index
    %33 = vector.load %arg5[%c0_16, %c0_17, %c0_18] : memref<1x1x96xf32, #tpu.memory_space<vmem>>, vector<1x1x96xf32>
    %34 = vector.shape_cast %33 : vector<1x1x96xf32> to vector<1x96xf32>
    %35 = vector.broadcast %34 : vector<1x96xf32> to vector<8x96xf32>
    %36 = arith.addf %32, %35 : vector<8x96xf32>
    %37 = vector.extract_strided_slice %36 {offsets = [0, 0], sizes = [8, 32], strides = [1, 1]} : vector<8x96xf32> to vector<8x32xf32>
    %cst_19 = arith.constant 0.353553385 : f32
    %38 = vector.broadcast %cst_19 : f32 to vector<8x32xf32>
    %39 = arith.mulf %37, %38 : vector<8x32xf32>
    %40 = vector.extract_strided_slice %36 {offsets = [0, 32], sizes = [8, 32], strides = [1, 1]} : vector<8x96xf32> to vector<8x32xf32>
    %41 = vector.extract_strided_slice %36 {offsets = [0, 64], sizes = [8, 32], strides = [1, 1]} : vector<8x96xf32> to vector<8x32xf32>
    %42 = tpu.iota {dimensions = array<i32: 0>} : vector<8x8xi32>
    %43 = tpu.iota {dimensions = array<i32: 1>} : vector<8x8xi32>
    %44 = arith.cmpi sle, %43, %42 : vector<8x8xi32>
    %c0_20 = arith.constant 0 : index
    %c0_21 = arith.constant 0 : index
    %c0_22 = arith.constant 0 : index
    %45 = vector.load %arg6[%c0_20, %c0_21, %c0_22] : memref<1x32x32xf32, #tpu.memory_space<vmem>>, vector<1x32x32xf32>
    %46 = vector.shape_cast %45 : vector<1x32x32xf32> to vector<32x32xf32>
    %c0_23 = arith.constant 0 : index
    %c0_24 = arith.constant 0 : index
    %c0_25 = arith.constant 0 : index
    %47 = vector.load %arg7[%c0_23, %c0_24, %c0_25] : memref<1x1x32xf32, #tpu.memory_space<vmem>>, vector<1x1x32xf32>
    %48 = vector.shape_cast %47 : vector<1x1x32xf32> to vector<1x32xf32>
    %49 = vector.shape_cast %48 : vector<1x32xf32> to vector<1x32xf32>
    %50 = vector.broadcast %49 : vector<1x32xf32> to vector<8x32xf32>
    %51 = vector.extract_strided_slice %39 {offsets = [0, 0], sizes = [8, 8], strides = [1, 1]} : vector<8x32xf32> to vector<8x8xf32>
    %52 = vector.extract_strided_slice %40 {offsets = [0, 0], sizes = [8, 8], strides = [1, 1]} : vector<8x32xf32> to vector<8x8xf32>
    %53 = vector.extract_strided_slice %41 {offsets = [0, 0], sizes = [8, 8], strides = [1, 1]} : vector<8x32xf32> to vector<8x8xf32>
    %cst_26 = arith.constant dense<0.000000e+00> : vector<8x8xf32>
    %54 = tpu.matmul %51, %52, %cst_26 {dimension_numbers = #tpu.dot_dimension_numbers<[1], [1], [0], [0], [0, 0, 1, 0], [], []>} : vector<8x8xf32>, vector<8x8xf32>, vector<8x8xf32> -> vector<8x8xf32>
    %cst_27 = arith.constant -3.40282347E+38 : f32
    %55 = vector.broadcast %cst_27 : f32 to vector<8x8xf32>
    %56 = arith.select %44, %54, %55 : vector<8x8xi1>, vector<8x8xf32>
    %cst_28 = arith.constant dense<0xFF800000> : vector<8xf32>
    %57 = vector.multi_reduction <maximumf>, %56, %cst_28 [1] : vector<8x8xf32> to vector<8xf32>
    %58 = vector.shape_cast %57 : vector<8xf32> to vector<8x1xf32>
    %cst_29 = arith.constant 0.000000e+00 : f32
    %59 = vector.broadcast %cst_29 : f32 to vector<8x1xf32>
    %60 = arith.maximumf %58, %59 : vector<8x1xf32>
    %61 = vector.broadcast %60 : vector<8x1xf32> to vector<8x8xf32>
    %62 = arith.subf %56, %61 : vector<8x8xf32>
    %63 = math.exp %62 : vector<8x8xf32>
    %cst_30 = arith.constant dense<0.000000e+00> : vector<8xf32>
    %64 = vector.multi_reduction <add>, %63, %cst_30 [1] : vector<8x8xf32> to vector<8xf32>
    %65 = vector.shape_cast %64 : vector<8xf32> to vector<8x1xf32>
    %cst_31 = arith.constant 0.000000e+00 : f32
    %66 = vector.broadcast %cst_31 : f32 to vector<8x1xf32>
    %67 = arith.subf %66, %60 : vector<8x1xf32>
    %68 = math.exp %67 : vector<8x1xf32>
    %cst_32 = arith.constant 1.600000e+01 : f32
    %69 = vector.broadcast %cst_32 : f32 to vector<8x1xf32>
    %70 = arith.mulf %69, %68 : vector<8x1xf32>
    %71 = arith.addf %65, %70 : vector<8x1xf32>
    %cst_33 = arith.constant 1.000000e+00 : f32
    %72 = vector.broadcast %cst_33 : f32 to vector<8x1xf32>
    %73 = arith.divf %72, %71 : vector<8x1xf32>
    %cst_34 = arith.constant dense<0.000000e+00> : vector<8x8xf32>
    %74 = tpu.matmul %63, %53, %cst_34 {dimension_numbers = #tpu.dot_dimension_numbers<[1], [0], [0], [1], [0, 0, 1, 1], [], []>} : vector<8x8xf32>, vector<8x8xf32>, vector<8x8xf32> -> vector<8x8xf32>
    %75 = vector.broadcast %73 : vector<8x1xf32> to vector<8x8xf32>
    %76 = arith.mulf %74, %75 : vector<8x8xf32>
    %77 = vector.extract_strided_slice %46 {offsets = [0, 0], sizes = [8, 32], strides = [1, 1]} : vector<32x32xf32> to vector<8x32xf32>
    %cst_35 = arith.constant dense<0.000000e+00> : vector<8x32xf32>
    %78 = tpu.matmul %76, %77, %cst_35 {dimension_numbers = #tpu.dot_dimension_numbers<[1], [0], [0], [1], [0, 0, 1, 1], [], []>} : vector<8x8xf32>, vector<8x32xf32>, vector<8x32xf32> -> vector<8x32xf32>
    %79 = arith.addf %50, %78 : vector<8x32xf32>
    %80 = vector.extract_strided_slice %39 {offsets = [0, 8], sizes = [8, 8], strides = [1, 1]} : vector<8x32xf32> to vector<8x8xf32>
    %81 = vector.extract_strided_slice %40 {offsets = [0, 8], sizes = [8, 8], strides = [1, 1]} : vector<8x32xf32> to vector<8x8xf32>
    %82 = vector.extract_strided_slice %41 {offsets = [0, 8], sizes = [8, 8], strides = [1, 1]} : vector<8x32xf32> to vector<8x8xf32>
    %cst_36 = arith.constant dense<0.000000e+00> : vector<8x8xf32>
    %83 = tpu.matmul %80, %81, %cst_36 {dimension_numbers = #tpu.dot_dimension_numbers<[1], [1], [0], [0], [0, 0, 1, 0], [], []>} : vector<8x8xf32>, vector<8x8xf32>, vector<8x8xf32> -> vector<8x8xf32>
    %cst_37 = arith.constant -3.40282347E+38 : f32
    %84 = vector.broadcast %cst_37 : f32 to vector<8x8xf32>
    %85 = arith.select %44, %83, %84 : vector<8x8xi1>, vector<8x8xf32>
    %cst_38 = arith.constant dense<0xFF800000> : vector<8xf32>
    %86 = vector.multi_reduction <maximumf>, %85, %cst_38 [1] : vector<8x8xf32> to vector<8xf32>
    %87 = vector.shape_cast %86 : vector<8xf32> to vector<8x1xf32>
    %cst_39 = arith.constant 0.000000e+00 : f32
    %88 = vector.broadcast %cst_39 : f32 to vector<8x1xf32>
    %89 = arith.maximumf %87, %88 : vector<8x1xf32>
    %90 = vector.broadcast %89 : vector<8x1xf32> to vector<8x8xf32>
    %91 = arith.subf %85, %90 : vector<8x8xf32>
    %92 = math.exp %91 : vector<8x8xf32>
    %cst_40 = arith.constant dense<0.000000e+00> : vector<8xf32>
    %93 = vector.multi_reduction <add>, %92, %cst_40 [1] : vector<8x8xf32> to vector<8xf32>
    %94 = vector.shape_cast %93 : vector<8xf32> to vector<8x1xf32>
    %cst_41 = arith.constant 0.000000e+00 : f32
    %95 = vector.broadcast %cst_41 : f32 to vector<8x1xf32>
    %96 = arith.subf %95, %89 : vector<8x1xf32>
    %97 = math.exp %96 : vector<8x1xf32>
    %cst_42 = arith.constant 1.600000e+01 : f32
    %98 = vector.broadcast %cst_42 : f32 to vector<8x1xf32>
    %99 = arith.mulf %98, %97 : vector<8x1xf32>
    %100 = arith.addf %94, %99 : vector<8x1xf32>
    %cst_43 = arith.constant 1.000000e+00 : f32
    %101 = vector.broadcast %cst_43 : f32 to vector<8x1xf32>
    %102 = arith.divf %101, %100 : vector<8x1xf32>
    %cst_44 = arith.constant dense<0.000000e+00> : vector<8x8xf32>
    %103 = tpu.matmul %92, %82, %cst_44 {dimension_numbers = #tpu.dot_dimension_numbers<[1], [0], [0], [1], [0, 0, 1, 1], [], []>} : vector<8x8xf32>, vector<8x8xf32>, vector<8x8xf32> -> vector<8x8xf32>
    %104 = vector.broadcast %102 : vector<8x1xf32> to vector<8x8xf32>
    %105 = arith.mulf %103, %104 : vector<8x8xf32>
    %106 = vector.extract_strided_slice %46 {offsets = [8, 0], sizes = [8, 32], strides = [1, 1]} : vector<32x32xf32> to vector<8x32xf32>
    %cst_45 = arith.constant dense<0.000000e+00> : vector<8x32xf32>
    %107 = tpu.matmul %105, %106, %cst_45 {dimension_numbers = #tpu.dot_dimension_numbers<[1], [0], [0], [1], [0, 0, 1, 1], [], []>} : vector<8x8xf32>, vector<8x32xf32>, vector<8x32xf32> -> vector<8x32xf32>
    %108 = arith.addf %79, %107 : vector<8x32xf32>
    %109 = vector.extract_strided_slice %39 {offsets = [0, 16], sizes = [8, 8], strides = [1, 1]} : vector<8x32xf32> to vector<8x8xf32>
    %110 = vector.extract_strided_slice %40 {offsets = [0, 16], sizes = [8, 8], strides = [1, 1]} : vector<8x32xf32> to vector<8x8xf32>
    %111 = vector.extract_strided_slice %41 {offsets = [0, 16], sizes = [8, 8], strides = [1, 1]} : vector<8x32xf32> to vector<8x8xf32>
    %cst_46 = arith.constant dense<0.000000e+00> : vector<8x8xf32>
    %112 = tpu.matmul %109, %110, %cst_46 {dimension_numbers = #tpu.dot_dimension_numbers<[1], [1], [0], [0], [0, 0, 1, 0], [], []>} : vector<8x8xf32>, vector<8x8xf32>, vector<8x8xf32> -> vector<8x8xf32>
    %cst_47 = arith.constant -3.40282347E+38 : f32
    %113 = vector.broadcast %cst_47 : f32 to vector<8x8xf32>
    %114 = arith.select %44, %112, %113 : vector<8x8xi1>, vector<8x8xf32>
    %cst_48 = arith.constant dense<0xFF800000> : vector<8xf32>
    %115 = vector.multi_reduction <maximumf>, %114, %cst_48 [1] : vector<8x8xf32> to vector<8xf32>
    %116 = vector.shape_cast %115 : vector<8xf32> to vector<8x1xf32>
    %cst_49 = arith.constant 0.000000e+00 : f32
    %117 = vector.broadcast %cst_49 : f32 to vector<8x1xf32>
    %118 = arith.maximumf %116, %117 : vector<8x1xf32>
    %119 = vector.broadcast %118 : vector<8x1xf32> to vector<8x8xf32>
    %120 = arith.subf %114, %119 : vector<8x8xf32>
    %121 = math.exp %120 : vector<8x8xf32>
    %cst_50 = arith.constant dense<0.000000e+00> : vector<8xf32>
    %122 = vector.multi_reduction <add>, %121, %cst_50 [1] : vector<8x8xf32> to vector<8xf32>
    %123 = vector.shape_cast %122 : vector<8xf32> to vector<8x1xf32>
    %cst_51 = arith.constant 0.000000e+00 : f32
    %124 = vector.broadcast %cst_51 : f32 to vector<8x1xf32>
    %125 = arith.subf %124, %118 : vector<8x1xf32>
    %126 = math.exp %125 : vector<8x1xf32>
    %cst_52 = arith.constant 1.600000e+01 : f32
    %127 = vector.broadcast %cst_52 : f32 to vector<8x1xf32>
    %128 = arith.mulf %127, %126 : vector<8x1xf32>
    %129 = arith.addf %123, %128 : vector<8x1xf32>
    %cst_53 = arith.constant 1.000000e+00 : f32
    %130 = vector.broadcast %cst_53 : f32 to vector<8x1xf32>
    %131 = arith.divf %130, %129 : vector<8x1xf32>
    %cst_54 = arith.constant dense<0.000000e+00> : vector<8x8xf32>
    %132 = tpu.matmul %121, %111, %cst_54 {dimension_numbers = #tpu.dot_dimension_numbers<[1], [0], [0], [1], [0, 0, 1, 1], [], []>} : vector<8x8xf32>, vector<8x8xf32>, vector<8x8xf32> -> vector<8x8xf32>
    %133 = vector.broadcast %131 : vector<8x1xf32> to vector<8x8xf32>
    %134 = arith.mulf %132, %133 : vector<8x8xf32>
    %135 = vector.extract_strided_slice %46 {offsets = [16, 0], sizes = [8, 32], strides = [1, 1]} : vector<32x32xf32> to vector<8x32xf32>
    %cst_55 = arith.constant dense<0.000000e+00> : vector<8x32xf32>
    %136 = tpu.matmul %134, %135, %cst_55 {dimension_numbers = #tpu.dot_dimension_numbers<[1], [0], [0], [1], [0, 0, 1, 1], [], []>} : vector<8x8xf32>, vector<8x32xf32>, vector<8x32xf32> -> vector<8x32xf32>
    %137 = arith.addf %108, %136 : vector<8x32xf32>
    %138 = vector.extract_strided_slice %39 {offsets = [0, 24], sizes = [8, 8], strides = [1, 1]} : vector<8x32xf32> to vector<8x8xf32>
    %139 = vector.extract_strided_slice %40 {offsets = [0, 24], sizes = [8, 8], strides = [1, 1]} : vector<8x32xf32> to vector<8x8xf32>
    %140 = vector.extract_strided_slice %41 {offsets = [0, 24], sizes = [8, 8], strides = [1, 1]} : vector<8x32xf32> to vector<8x8xf32>
    %cst_56 = arith.constant dense<0.000000e+00> : vector<8x8xf32>
    %141 = tpu.matmul %138, %139, %cst_56 {dimension_numbers = #tpu.dot_dimension_numbers<[1], [1], [0], [0], [0, 0, 1, 0], [], []>} : vector<8x8xf32>, vector<8x8xf32>, vector<8x8xf32> -> vector<8x8xf32>
    %cst_57 = arith.constant -3.40282347E+38 : f32
    %142 = vector.broadcast %cst_57 : f32 to vector<8x8xf32>
    %143 = arith.select %44, %141, %142 : vector<8x8xi1>, vector<8x8xf32>
    %cst_58 = arith.constant dense<0xFF800000> : vector<8xf32>
    %144 = vector.multi_reduction <maximumf>, %143, %cst_58 [1] : vector<8x8xf32> to vector<8xf32>
    %145 = vector.shape_cast %144 : vector<8xf32> to vector<8x1xf32>
    %cst_59 = arith.constant 0.000000e+00 : f32
    %146 = vector.broadcast %cst_59 : f32 to vector<8x1xf32>
    %147 = arith.maximumf %145, %146 : vector<8x1xf32>
    %148 = vector.broadcast %147 : vector<8x1xf32> to vector<8x8xf32>
    %149 = arith.subf %143, %148 : vector<8x8xf32>
    %150 = math.exp %149 : vector<8x8xf32>
    %cst_60 = arith.constant dense<0.000000e+00> : vector<8xf32>
    %151 = vector.multi_reduction <add>, %150, %cst_60 [1] : vector<8x8xf32> to vector<8xf32>
    %152 = vector.shape_cast %151 : vector<8xf32> to vector<8x1xf32>
    %cst_61 = arith.constant 0.000000e+00 : f32
    %153 = vector.broadcast %cst_61 : f32 to vector<8x1xf32>
    %154 = arith.subf %153, %147 : vector<8x1xf32>
    %155 = math.exp %154 : vector<8x1xf32>
    %cst_62 = arith.constant 1.600000e+01 : f32
    %156 = vector.broadcast %cst_62 : f32 to vector<8x1xf32>
    %157 = arith.mulf %156, %155 : vector<8x1xf32>
    %158 = arith.addf %152, %157 : vector<8x1xf32>
    %cst_63 = arith.constant 1.000000e+00 : f32
    %159 = vector.broadcast %cst_63 : f32 to vector<8x1xf32>
    %160 = arith.divf %159, %158 : vector<8x1xf32>
    %cst_64 = arith.constant dense<0.000000e+00> : vector<8x8xf32>
    %161 = tpu.matmul %150, %140, %cst_64 {dimension_numbers = #tpu.dot_dimension_numbers<[1], [0], [0], [1], [0, 0, 1, 1], [], []>} : vector<8x8xf32>, vector<8x8xf32>, vector<8x8xf32> -> vector<8x8xf32>
    %162 = vector.broadcast %160 : vector<8x1xf32> to vector<8x8xf32>
    %163 = arith.mulf %161, %162 : vector<8x8xf32>
    %164 = vector.extract_strided_slice %46 {offsets = [24, 0], sizes = [8, 32], strides = [1, 1]} : vector<32x32xf32> to vector<8x32xf32>
    %cst_65 = arith.constant dense<0.000000e+00> : vector<8x32xf32>
    %165 = tpu.matmul %163, %164, %cst_65 {dimension_numbers = #tpu.dot_dimension_numbers<[1], [0], [0], [1], [0, 0, 1, 1], [], []>} : vector<8x8xf32>, vector<8x32xf32>, vector<8x32xf32> -> vector<8x32xf32>
    %166 = arith.addf %137, %165 : vector<8x32xf32>
    %167 = arith.addf %3, %166 : vector<8x32xf32>
    %c0_66 = arith.constant 0 : index
    %c0_67 = arith.constant 0 : index
    %c0_68 = arith.constant 0 : index
    %168 = vector.load %arg8[%c0_66, %c0_67, %c0_68] : memref<1x1x32xf32, #tpu.memory_space<vmem>>, vector<1x1x32xf32>
    %169 = vector.shape_cast %168 : vector<1x1x32xf32> to vector<1x32xf32>
    %c0_69 = arith.constant 0 : index
    %c0_70 = arith.constant 0 : index
    %c0_71 = arith.constant 0 : index
    %170 = vector.load %arg9[%c0_69, %c0_70, %c0_71] : memref<1x1x32xf32, #tpu.memory_space<vmem>>, vector<1x1x32xf32>
    %171 = vector.shape_cast %170 : vector<1x1x32xf32> to vector<1x32xf32>
    %cst_72 = arith.constant dense<0.000000e+00> : vector<8xf32>
    %172 = vector.multi_reduction <add>, %167, %cst_72 [1] : vector<8x32xf32> to vector<8xf32>
    %173 = vector.shape_cast %172 : vector<8xf32> to vector<8x1xf32>
    %cst_73 = arith.constant 3.200000e+01 : f32
    %174 = vector.broadcast %cst_73 : f32 to vector<8x1xf32>
    %175 = arith.divf %173, %174 : vector<8x1xf32>
    %176 = vector.broadcast %175 : vector<8x1xf32> to vector<8x32xf32>
    %177 = arith.subf %167, %176 : vector<8x32xf32>
    %178 = arith.mulf %177, %177 : vector<8x32xf32>
    %cst_74 = arith.constant dense<0.000000e+00> : vector<8xf32>
    %179 = vector.multi_reduction <add>, %178, %cst_74 [1] : vector<8x32xf32> to vector<8xf32>
    %180 = vector.shape_cast %179 : vector<8xf32> to vector<8x1xf32>
    %cst_75 = arith.constant 3.200000e+01 : f32
    %181 = vector.broadcast %cst_75 : f32 to vector<8x1xf32>
    %182 = arith.divf %180, %181 : vector<8x1xf32>
    %183 = vector.broadcast %175 : vector<8x1xf32> to vector<8x32xf32>
    %184 = arith.subf %167, %183 : vector<8x32xf32>
    %cst_76 = arith.constant 9.99999974E-6 : f32
    %185 = vector.broadcast %cst_76 : f32 to vector<8x1xf32>
    %186 = arith.addf %182, %185 : vector<8x1xf32>
    %187 = math.rsqrt %186 : vector<8x1xf32>
    %188 = vector.broadcast %187 : vector<8x1xf32> to vector<8x32xf32>
    %189 = arith.mulf %184, %188 : vector<8x32xf32>
    %190 = vector.broadcast %169 : vector<1x32xf32> to vector<8x32xf32>
    %191 = arith.mulf %189, %190 : vector<8x32xf32>
    %192 = vector.broadcast %171 : vector<1x32xf32> to vector<8x32xf32>
    %193 = arith.addf %191, %192 : vector<8x32xf32>
    %c0_77 = arith.constant 0 : index
    %c0_78 = arith.constant 0 : index
    %c0_79 = arith.constant 0 : index
    %194 = vector.load %arg10[%c0_77, %c0_78, %c0_79] : memref<1x32x128xf32, #tpu.memory_space<vmem>>, vector<1x32x128xf32>
    %195 = vector.shape_cast %194 : vector<1x32x128xf32> to vector<32x128xf32>
    %cst_80 = arith.constant dense<0.000000e+00> : vector<8x128xf32>
    %196 = tpu.matmul %193, %195, %cst_80 {dimension_numbers = #tpu.dot_dimension_numbers<[1], [0], [0], [1], [0, 0, 1, 1], [], []>} : vector<8x32xf32>, vector<32x128xf32>, vector<8x128xf32> -> vector<8x128xf32>
    %c0_81 = arith.constant 0 : index
    %c0_82 = arith.constant 0 : index
    %c0_83 = arith.constant 0 : index
    %197 = vector.load %arg11[%c0_81, %c0_82, %c0_83] : memref<1x1x128xf32, #tpu.memory_space<vmem>>, vector<1x1x128xf32>
    %198 = vector.shape_cast %197 : vector<1x1x128xf32> to vector<1x128xf32>
    %199 = vector.broadcast %198 : vector<1x128xf32> to vector<8x128xf32>
    %200 = arith.addf %196, %199 : vector<8x128xf32>
    %cst_84 = arith.constant 5.000000e-01 : f32
    %201 = vector.broadcast %cst_84 : f32 to vector<8x128xf32>
    %202 = arith.mulf %201, %200 : vector<8x128xf32>
    %cst_85 = arith.constant 4.471500e-02 : f32
    %203 = vector.broadcast %cst_85 : f32 to vector<8x128xf32>
    %204 = arith.mulf %203, %200 : vector<8x128xf32>
    %205 = arith.mulf %204, %200 : vector<8x128xf32>
    %206 = arith.mulf %205, %200 : vector<8x128xf32>
    %207 = arith.addf %200, %206 : vector<8x128xf32>
    %cst_86 = arith.constant 0.797884583 : f32
    %208 = vector.broadcast %cst_86 : f32 to vector<8x128xf32>
    %209 = arith.mulf %208, %207 : vector<8x128xf32>
    %210 = math.tanh %209 : vector<8x128xf32>
    %cst_87 = arith.constant 1.000000e+00 : f32
    %211 = vector.broadcast %cst_87 : f32 to vector<8x128xf32>
    %212 = arith.addf %211, %210 : vector<8x128xf32>
    %213 = arith.mulf %202, %212 : vector<8x128xf32>
    %c0_88 = arith.constant 0 : index
    %c0_89 = arith.constant 0 : index
    %c0_90 = arith.constant 0 : index
    %214 = vector.load %arg12[%c0_88, %c0_89, %c0_90] : memref<1x128x32xf32, #tpu.memory_space<vmem>>, vector<1x128x32xf32>
    %215 = vector.shape_cast %214 : vector<1x128x32xf32> to vector<128x32xf32>
    %cst_91 = arith.constant dense<0.000000e+00> : vector<8x32xf32>
    %216 = tpu.matmul %213, %215, %cst_91 {dimension_numbers = #tpu.dot_dimension_numbers<[1], [0], [0], [1], [0, 0, 1, 1], [], []>} : vector<8x128xf32>, vector<128x32xf32>, vector<8x32xf32> -> vector<8x32xf32>
    %c0_92 = arith.constant 0 : index
    %c0_93 = arith.constant 0 : index
    %c0_94 = arith.constant 0 : index
    %217 = vector.load %arg13[%c0_92, %c0_93, %c0_94] : memref<1x1x32xf32, #tpu.memory_space<vmem>>, vector<1x1x32xf32>
    %218 = vector.shape_cast %217 : vector<1x1x32xf32> to vector<1x32xf32>
    %219 = vector.broadcast %218 : vector<1x32xf32> to vector<8x32xf32>
    %220 = arith.addf %216, %219 : vector<8x32xf32>
    %221 = arith.addf %167, %220 : vector<8x32xf32>
    %c0_95 = arith.constant 0 : index
    %c0_96 = arith.constant 0 : index
    %222 = vector.load %arg18[%c0_95, %c0_96] : memref<8x32xf32, #tpu.memory_space<vmem>>, vector<8x32xf32>
    tpu.vector_store %arg18[%c0_95, %c0_96], %221 {strides = array<i32>} : memref<8x32xf32, #tpu.memory_space<vmem>>, vector<8x32xf32>,
    %c1_i32 = arith.constant 1 : i32
    %223 = arith.cmpi eq, %arg0, %c1_i32 : i32
    %224 = arith.extui %223 : i1 to i32
    %c0_i32_97 = arith.constant 0 : i32
    %225 = arith.cmpi ne, %224, %c0_i32_97 : i32
    scf.if %225 {
      %c0_98 = arith.constant 0 : index
      %c0_99 = arith.constant 0 : index
      %226 = vector.load %arg14[%c0_98, %c0_99] : memref<1x32xf32, #tpu.memory_space<vmem>>, vector<1x32xf32>
      %c0_100 = arith.constant 0 : index
      %c0_101 = arith.constant 0 : index
      %227 = vector.load %arg15[%c0_100, %c0_101] : memref<1x32xf32, #tpu.memory_space<vmem>>, vector<1x32xf32>
      %cst_102 = arith.constant dense<0.000000e+00> : vector<8xf32>
      %228 = vector.multi_reduction <add>, %221, %cst_102 [1] : vector<8x32xf32> to vector<8xf32>
      %229 = vector.shape_cast %228 : vector<8xf32> to vector<8x1xf32>
      %cst_103 = arith.constant 3.200000e+01 : f32
      %230 = vector.broadcast %cst_103 : f32 to vector<8x1xf32>
      %231 = arith.divf %229, %230 : vector<8x1xf32>
      %232 = vector.broadcast %231 : vector<8x1xf32> to vector<8x32xf32>
      %233 = arith.subf %221, %232 : vector<8x32xf32>
      %234 = arith.mulf %233, %233 : vector<8x32xf32>
      %cst_104 = arith.constant dense<0.000000e+00> : vector<8xf32>
      %235 = vector.multi_reduction <add>, %234, %cst_104 [1] : vector<8x32xf32> to vector<8xf32>
      %236 = vector.shape_cast %235 : vector<8xf32> to vector<8x1xf32>
      %cst_105 = arith.constant 3.200000e+01 : f32
      %237 = vector.broadcast %cst_105 : f32 to vector<8x1xf32>
      %238 = arith.divf %236, %237 : vector<8x1xf32>
      %239 = vector.broadcast %231 : vector<8x1xf32> to vector<8x32xf32>
      %240 = arith.subf %221, %239 : vector<8x32xf32>
      %cst_106 = arith.constant 9.99999974E-6 : f32
      %241 = vector.broadcast %cst_106 : f32 to vector<8x1xf32>
      %242 = arith.addf %238, %241 : vector<8x1xf32>
      %243 = math.rsqrt %242 : vector<8x1xf32>
      %244 = vector.broadcast %243 : vector<8x1xf32> to vector<8x32xf32>
      %245 = arith.mulf %240, %244 : vector<8x32xf32>
      %246 = vector.broadcast %226 : vector<1x32xf32> to vector<8x32xf32>
      %247 = arith.mulf %245, %246 : vector<8x32xf32>
      %248 = vector.broadcast %227 : vector<1x32xf32> to vector<8x32xf32>
      %249 = arith.addf %247, %248 : vector<8x32xf32>
      %c0_107 = arith.constant 0 : index
      %c0_108 = arith.constant 0 : index
      %250 = vector.load %arg16[%c0_107, %c0_108] : memref<64x32xf32, #tpu.memory_space<vmem>>, vector<64x32xf32>
      %cst_109 = arith.constant dense<0.000000e+00> : vector<8x64xf32>
      %251 = tpu.matmul %249, %250, %cst_109 {dimension_numbers = #tpu.dot_dimension_numbers<[1], [1], [0], [0], [0, 0, 1, 0], [], []>} : vector<8x32xf32>, vector<64x32xf32>, vector<8x64xf32> -> vector<8x64xf32>
      %c0_110 = arith.constant 0 : index
      %c0_111 = arith.constant 0 : index
      %252 = vector.load %arg17[%c0_110, %c0_111] : memref<8x64xf32, #tpu.memory_space<vmem>>, vector<8x64xf32>
      tpu.vector_store %arg17[%c0_110, %c0_111], %251 {strides = array<i32>} : memref<8x64xf32, #tpu.memory_space<vmem>>, vector<8x64xf32>,
    } else {
    }
    return
  }
  func.func @transform_0(%arg0: i32) -> (i32, i32) {
    %c0_i32 = arith.constant 0 : i32
    %c0_i32_0 = arith.constant 0 : i32
    %c0_i32_1 = arith.constant 0 : i32
    return %c0_i32, %c0_i32_0 : i32, i32
  }
  func.func @transform_1(%arg0: i32) -> (i32, i32, i32) {
    %c0_i32 = arith.constant 0 : i32
    %c0_i32_0 = arith.constant 0 : i32
    %c0_i32_1 = arith.constant 0 : i32
    return %arg0, %c0_i32, %c0_i32_0 : i32, i32, i32
  }
  func.func @transform_2(%arg0: i32) -> (i32, i32, i32) {
    %c0_i32 = arith.constant 0 : i32
    %c0_i32_0 = arith.constant 0 : i32
    %c0_i32_1 = arith.constant 0 : i32
    return %arg0, %c0_i32, %c0_i32_0 : i32, i32, i32
  }
  func.func @transform_3(%arg0: i32) -> (i32, i32, i32) {
    %c0_i32 = arith.constant 0 : i32
    %c0_i32_0 = arith.constant 0 : i32
    %c0_i32_1 = arith.constant 0 : i32
    return %arg0, %c0_i32, %c0_i32_0 : i32, i32, i32
  }
  func.func @transform_4(%arg0: i32) -> (i32, i32, i32) {
    %c0_i32 = arith.constant 0 : i32
    %c0_i32_0 = arith.constant 0 : i32
    %c0_i32_1 = arith.constant 0 : i32
    return %arg0, %c0_i32, %c0_i32_0 : i32, i32, i32
  }
  func.func @transform_5(%arg0: i32) -> (i32, i32, i32) {
    %c0_i32 = arith.constant 0 : i32
    %c0_i32_0 = arith.constant 0 : i32
    %c0_i32_1 = arith.constant 0 : i32
    return %arg0, %c0_i32, %c0_i32_0 : i32, i32, i32
  }
  func.func @transform_6(%arg0: i32) -> (i32, i32, i32) {
    %c0_i32 = arith.constant 0 : i32
    %c0_i32_0 = arith.constant 0 : i32
    %c0_i32_1 = arith.constant 0 : i32
    return %arg0, %c0_i32, %c0_i32_0 : i32, i32, i32
  }
  func.func @transform_7(%arg0: i32) -> (i32, i32, i32) {
    %c0_i32 = arith.constant 0 : i32
    %c0_i32_0 = arith.constant 0 : i32
    %c0_i32_1 = arith.constant 0 : i32
    return %arg0, %c0_i32, %c0_i32_0 : i32, i32, i32
  }
  func.func @transform_8(%arg0: i32) -> (i32, i32, i32) {
    %c0_i32 = arith.constant 0 : i32
    %c0_i32_0 = arith.constant 0 : i32
    %c0_i32_1 = arith.constant 0 : i32
    return %arg0, %c0_i32, %c0_i32_0 : i32, i32, i32
  }
  func.func @transform_9(%arg0: i32) -> (i32, i32, i32) {
    %c0_i32 = arith.constant 0 : i32
    %c0_i32_0 = arith.constant 0 : i32
    %c0_i32_1 = arith.constant 0 : i32
    return %arg0, %c0_i32, %c0_i32_0 : i32, i32, i32
  }
  func.func @transform_10(%arg0: i32) -> (i32, i32, i32) {
    %c0_i32 = arith.constant 0 : i32
    %c0_i32_0 = arith.constant 0 : i32
    %c0_i32_1 = arith.constant 0 : i32
    return %arg0, %c0_i32, %c0_i32_0 : i32, i32, i32
  }
  func.func @transform_11(%arg0: i32) -> (i32, i32, i32) {
    %c0_i32 = arith.constant 0 : i32
    %c0_i32_0 = arith.constant 0 : i32
    %c0_i32_1 = arith.constant 0 : i32
    return %arg0, %c0_i32, %c0_i32_0 : i32, i32, i32
  }
  func.func @transform_12(%arg0: i32) -> (i32, i32, i32) {
    %c0_i32 = arith.constant 0 : i32
    %c0_i32_0 = arith.constant 0 : i32
    %c0_i32_1 = arith.constant 0 : i32
    return %arg0, %c0_i32, %c0_i32_0 : i32, i32, i32
  }
  func.func @transform_13(%arg0: i32) -> (i32, i32) {
    %c0_i32 = arith.constant 0 : i32
    %c0_i32_0 = arith.constant 0 : i32
    %c0_i32_1 = arith.constant 0 : i32
    return %c0_i32, %c0_i32_0 : i32, i32
  }
  func.func @transform_14(%arg0: i32) -> (i32, i32) {
    %c0_i32 = arith.constant 0 : i32
    %c0_i32_0 = arith.constant 0 : i32
    %c0_i32_1 = arith.constant 0 : i32
    return %c0_i32, %c0_i32_0 : i32, i32
  }
  func.func @transform_15(%arg0: i32) -> (i32, i32) {
    %c0_i32 = arith.constant 0 : i32
    %c0_i32_0 = arith.constant 0 : i32
    %c0_i32_1 = arith.constant 0 : i32
    return %c0_i32, %c0_i32_0 : i32, i32
  }
  func.func @transform_16(%arg0: i32) -> (i32, i32) {
    %c0_i32 = arith.constant 0 : i32
    %c0_i32_0 = arith.constant 0 : i32
    %c0_i32_1 = arith.constant 0 : i32
    return %c0_i32, %c0_i32_0 : i32, i32
  }
}

</mosaic_0001>

<llo_original>
// kernel: stateful_zenz_forward.1
$region0: #{stateful_zenz_forward.1}
  #allocation0 [shape = 'u32[]', space=smem, size = 0x4, offset = 0x4, fixed_abs, tag = 'smem constant byte address 0x4 - core index']
  #allocation1 [shape = 'u32[144,128]{1,0:T(1,128)}', space=vmem, size = 0x12000, scoped, tag = 'internal scratch']
  #allocation2 [shape = 'f32[8,32]{1,0:T(8,128)}', space=vmem, size = 0x1000, scoped, tag = 'scratch operand']
  %s0 = inlined_call_operand.vmem [shape: f32[8,32], index: 0, kind: input, shape index: {}]
  %s1 = inlined_call_operand.vmem [shape: f32[2,1,32], index: 1, kind: input, shape index: {}]
  %s2 = inlined_call_operand.vmem [shape: f32[2,1,32], index: 2, kind: input, shape index: {}]
  %s3 = inlined_call_operand.vmem [shape: f32[2,32,96], index: 3, kind: input, shape index: {}]
  %s4 = inlined_call_operand.vmem [shape: f32[2,1,96], index: 4, kind: input, shape index: {}]
  %s5 = inlined_call_operand.vmem [shape: f32[2,32,32], index: 5, kind: input, shape index: {}]
  %s6 = inlined_call_operand.vmem [shape: f32[2,1,32], index: 6, kind: input, shape index: {}]
  %s7 = inlined_call_operand.vmem [shape: f32[2,1,32], index: 7, kind: input, shape index: {}]
  %s8 = inlined_call_operand.vmem [shape: f32[2,1,32], index: 8, kind: input, shape index: {}]
  %s9 = inlined_call_operand.vmem [shape: f32[2,32,128], index: 9, kind: input, shape index: {}]
  %s10 = inlined_call_operand.vmem [shape: f32[2,1,128], index: 10, kind: input, shape index: {}]
  %s11 = inlined_call_operand.vmem [shape: f32[2,128,32], index: 11, kind: input, shape index: {}]
  %s12 = inlined_call_operand.vmem [shape: f32[2,1,32], index: 12, kind: input, shape index: {}]
  %s13 = inlined_call_operand.vmem [shape: f32[1,32], index: 13, kind: input, shape index: {}]
  %s14 = inlined_call_operand.vmem [shape: f32[1,32], index: 14, kind: input, shape index: {}]
  %s15 = inlined_call_operand.vmem [shape: f32[64,32], index: 15, kind: input, shape index: {}]
  %s16 = inlined_call_operand.hbm [shape: f32[8,64], index: 16, kind: output, shape index: {}]
  %s17 = sld [smem:[#allocation0]]
  $region105: #{stateful_zenz_forward.1} parent=0
    _
  %s19 = ssub.s32 1, %s17
  %s20 = scalar_select 0, %s19, %s17
  $region1: #{stateful_zenz_forward.1} parent=0
    #allocation3 [shape = 'u8[4096]{0}', space=vmem, size = 0x1000, scoped, tag = 'output window, operand 0, single buffered']
    #allocation4 [shape = 's32[2]{0}', space=sflag, size = 0x8, scoped, tag = 'scoped memory for stateful_zenz_forward.1']
    %21 = vsyncpa [#allocation4], 0
    loop: start=0, step=1, limit=4
    $region2: #{stateful_zenz_forward.1} parent=1 // loop_pre_header
      _
    $region3: #{stateful_zenz_forward.1} parent=1 // loop_header
      %s23 = sphi 0, %s27
      %p24 = scmp.ge.s32.totalorder %s23, 4
      %s31 = sphi 0, %s31
      %s33 = sphi 0, %s31
      %s34 = sphi 0, %s33
      %s48 = sphi 0, %s34
      %s54 = sphi 0, %s56
      %s57 = sphi 0, %s54
      %s58 = sphi 0, %s57
      %s74 = sphi 0, %s58
      %s80 = sphi 0, %s82
      %s83 = sphi 0, %s80
      %s84 = sphi 0, %s83
      %s100 = sphi 0, %s84
      %s106 = sphi 0, %s108
      %s109 = sphi 0, %s106
      %s110 = sphi 0, %s109
      %s126 = sphi 0, %s110
      %s132 = sphi 0, %s134
      %s135 = sphi 0, %s132
      %s136 = sphi 0, %s135
      %s152 = sphi 0, %s136
      %s158 = sphi 0, %s160
      %s161 = sphi 0, %s158
      %s162 = sphi 0, %s161
      %s178 = sphi 0, %s162
      %s184 = sphi 0, %s186
      %s187 = sphi 0, %s184
      %s188 = sphi 0, %s187
      %s204 = sphi 0, %s188
      %s210 = sphi 0, %s212
      %s213 = sphi 0, %s210
      %s214 = sphi 0, %s213
      %s230 = sphi 0, %s214
      %s236 = sphi 0, %s238
      %s239 = sphi 0, %s236
      %s240 = sphi 0, %s239
      %s256 = sphi 0, %s240
      %s262 = sphi 0, %s264
      %s265 = sphi 0, %s262
      %s266 = sphi 0, %s265
      %s282 = sphi 0, %s266
      %s288 = sphi 0, %s290
      %s291 = sphi 0, %s288
      %s292 = sphi 0, %s291
      %s308 = sphi 0, %s292
      %s314 = sphi 0, %s316
      %s317 = sphi 0, %s314
      %s318 = sphi 0, %s317
      %s334 = sphi 0, %s318
      %s340 = sphi 0, %s342
      %s343 = sphi 0, %s340
      %s344 = sphi 0, %s343
      %s360 = sphi 0, %s344
      %s364 = sphi 0, %s364
      %s366 = sphi 0, %s364
      %s367 = sphi 0, %s366
      %s381 = sphi 0, %s367
      %s385 = sphi 0, %s385
      %s387 = sphi 0, %s385
      %s388 = sphi 0, %s387
      %s402 = sphi 0, %s388
      %s406 = sphi 0, %s406
      %s408 = sphi 0, %s406
      %s409 = sphi 0, %s408
      %s423 = sphi 0, %s409
      %s427 = sphi 0, %s427
      %s429 = sphi 0, %s427
      %s430 = sphi 0, %s429
      %s444 = sphi 0, %s430
    $region4: #{stateful_zenz_forward.1} parent=1 // loop_header_branch
      %26 = sbr.rel (%p24) target = $region8
    $region5: #{stateful_zenz_forward.1} parent=1 // loop_body
      %s28 = ssub.s32 %s23, 1
      %s29 = ssub.s32 %s23, 2
      %s30 = sadd.s32 %s23, 1
      %s32 = sadd.s32 %s31, 1
      %p35 = scmp.eq.s32.totalorder %s23, 1
      %p36 = scmp.ne.s32.totalorder %s31, %s33
      %p37 = scmp.eq.s32.totalorder %s23, 0
      %p38 = por %p36, %p37
      %p39 = scmp.ne.s32.totalorder %s31, %s33
      %p40 = scmp.eq.s32.totalorder %s28, 1
      %p41 = por %p39, %p40
      %p42 = scmp.ne.s32.totalorder %s33, %s34
      %p43 = scmp.eq.s32.totalorder %s28, 0
      %p44 = por %p42, %p43
      %p45 = scmp.ne.s32.totalorder %s33, %s34
      %p46 = scmp.eq.s32.totalorder %s29, 1
      %p47 = por %p45, %p46
      %p49 = scmp.ne.s32.totalorder %s34, %s48
      %p50 = scmp.eq.s32.totalorder %s29, 0
      %p51 = por %p49, %p50
      %s52 = ssub.s32 %s23, %s30
      %p53 = scmp.eq.s32.totalorder %s52, 0
      %s55 = sadd.s32 %s54, 1
      %s56 = scalar_select %p53, %s54, %s55
      %p59 = pneg %p53
      %p60 = scmp.eq.s32.totalorder %s23, 1
      %p61 = por %p59, %p60
      %p62 = scmp.ne.s32.totalorder %s54, %s57
      %p63 = scmp.eq.s32.totalorder %s23, 0
      %p64 = por %p62, %p63
      %p65 = scmp.ne.s32.totalorder %s54, %s57
      %p66 = scmp.eq.s32.totalorder %s28, 1
      %p67 = por %p65, %p66
      %p68 = scmp.ne.s32.totalorder %s57, %s58
      %p69 = scmp.eq.s32.totalorder %s28, 0
      %p70 = por %p68, %p69
      %p71 = scmp.ne.s32.totalorder %s57, %s58
      %p72 = scmp.eq.s32.totalorder %s29, 1
      %p73 = por %p71, %p72
      %p75 = scmp.ne.s32.totalorder %s58, %s74
      %p76 = scmp.eq.s32.totalorder %s29, 0
      %p77 = por %p75, %p76
      %s78 = ssub.s32 %s23, %s30
      %p79 = scmp.eq.s32.totalorder %s78, 0
      %s81 = sadd.s32 %s80, 1
      %s82 = scalar_select %p79, %s80, %s81
      %p85 = pneg %p79
      %p86 = scmp.eq.s32.totalorder %s23, 1
      %p87 = por %p85, %p86
      %p88 = scmp.ne.s32.totalorder %s80, %s83
      %p89 = scmp.eq.s32.totalorder %s23, 0
      %p90 = por %p88, %p89
      %p91 = scmp.ne.s32.totalorder %s80, %s83
      %p92 = scmp.eq.s32.totalorder %s28, 1
      %p93 = por %p91, %p92
      %p94 = scmp.ne.s32.totalorder %s83, %s84
      %p95 = scmp.eq.s32.totalorder %s28, 0
      %p96 = por %p94, %p95
      %p97 = scmp.ne.s32.totalorder %s83, %s84
      %p98 = scmp.eq.s32.totalorder %s29, 1
      %p99 = por %p97, %p98
      %p101 = scmp.ne.s32.totalorder %s84, %s100
      %p102 = scmp.eq.s32.totalorder %s29, 0
      %p103 = por %p101, %p102
      %s104 = ssub.s32 %s23, %s30
      %p105 = scmp.eq.s32.totalorder %s104, 0
      %s107 = sadd.s32 %s106, 1
      %s108 = scalar_select %p105, %s106, %s107
      %p111 = pneg %p105
      %p112 = scmp.eq.s32.totalorder %s23, 1
      %p113 = por %p111, %p112
      %p114 = scmp.ne.s32.totalorder %s106, %s109
      %p115 = scmp.eq.s32.totalorder %s23, 0
      %p116 = por %p114, %p115
      %p117 = scmp.ne.s32.totalorder %s106, %s109
      %p118 = scmp.eq.s32.totalorder %s28, 1
      %p119 = por %p117, %p118
      %p120 = scmp.ne.s32.totalorder %s109, %s110
      %p121 = scmp.eq.s32.totalorder %s28, 0
      %p122 = por %p120, %p121
      %p123 = scmp.ne.s32.totalorder %s109, %s110
      %p124 = scmp.eq.s32.totalorder %s29, 1
      %p125 = por %p123, %p124
      %p127 = scmp.ne.s32.totalorder %s110, %s126
      %p128 = scmp.eq.s32.totalorder %s29, 0
      %p129 = por %p127, %p128
      %s130 = ssub.s32 %s23, %s30
      %p131 = scmp.eq.s32.totalorder %s130, 0
      %s133 = sadd.s32 %s132, 1
      %s134 = scalar_select %p131, %s132, %s133
      %p137 = pneg %p131
      %p138 = scmp.eq.s32.totalorder %s23, 1
      %p139 = por %p137, %p138
      %p140 = scmp.ne.s32.totalorder %s132, %s135
      %p141 = scmp.eq.s32.totalorder %s23, 0
      %p142 = por %p140, %p141
      %p143 = scmp.ne.s32.totalorder %s132, %s135
      %p144 = scmp.eq.s32.totalorder %s28, 1
      %p145 = por %p143, %p144
      %p146 = scmp.ne.s32.totalorder %s135, %s136
      %p147 = scmp.eq.s32.totalorder %s28, 0
      %p148 = por %p146, %p147
      %p149 = scmp.ne.s32.totalorder %s135, %s136
      %p150 = scmp.eq.s32.totalorder %s29, 1
      %p151 = por %p149, %p150
      %p153 = scmp.ne.s32.totalorder %s136, %s152
      %p154 = scmp.eq.s32.totalorder %s29, 0
      %p155 = por %p153, %p154
      %s156 = ssub.s32 %s23, %s30
      %p157 = scmp.eq.s32.totalorder %s156, 0
      %s159 = sadd.s32 %s158, 1
      %s160 = scalar_select %p157, %s158, %s159
      %p163 = pneg %p157
      %p164 = scmp.eq.s32.totalorder %s23, 1
      %p165 = por %p163, %p164
      %p166 = scmp.ne.s32.totalorder %s158, %s161
      %p167 = scmp.eq.s32.totalorder %s23, 0
      %p168 = por %p166, %p167
      %p169 = scmp.ne.s32.totalorder %s158, %s161
      %p170 = scmp.eq.s32.totalorder %s28, 1
      %p171 = por %p169, %p170
      %p172 = scmp.ne.s32.totalorder %s161, %s162
      %p173 = scmp.eq.s32.totalorder %s28, 0
      %p174 = por %p172, %p173
      %p175 = scmp.ne.s32.totalorder %s161, %s162
      %p176 = scmp.eq.s32.totalorder %s29, 1
      %p177 = por %p175, %p176
      %p179 = scmp.ne.s32.totalorder %s162, %s178
      %p180 = scmp.eq.s32.totalorder %s29, 0
      %p181 = por %p179, %p180
      %s182 = ssub.s32 %s23, %s30
      %p183 = scmp.eq.s32.totalorder %s182, 0
      %s185 = sadd.s32 %s184, 1
      %s186 = scalar_select %p183, %s184, %s185
      %p189 = pneg %p183
      %p190 = scmp.eq.s32.totalorder %s23, 1
      %p191 = por %p189, %p190
      %p192 = scmp.ne.s32.totalorder %s184, %s187
      %p193 = scmp.eq.s32.totalorder %s23, 0
      %p194 = por %p192, %p193
      %p195 = scmp.ne.s32.totalorder %s184, %s187
      %p196 = scmp.eq.s32.totalorder %s28, 1
      %p197 = por %p195, %p196
      %p198 = scmp.ne.s32.totalorder %s187, %s188
      %p199 = scmp.eq.s32.totalorder %s28, 0
      %p200 = por %p198, %p199
      %p201 = scmp.ne.s32.totalorder %s187, %s188
      %p202 = scmp.eq.s32.totalorder %s29, 1
      %p203 = por %p201, %p202
      %p205 = scmp.ne.s32.totalorder %s188, %s204
      %p206 = scmp.eq.s32.totalorder %s29, 0
      %p207 = por %p205, %p206
      %s208 = ssub.s32 %s23, %s30
      %p209 = scmp.eq.s32.totalorder %s208, 0
      %s211 = sadd.s32 %s210, 1
      %s212 = scalar_select %p209, %s210, %s211
      %p215 = pneg %p209
      %p216 = scmp.eq.s32.totalorder %s23, 1
      %p217 = por %p215, %p216
      %p218 = scmp.ne.s32.totalorder %s210, %s213
      %p219 = scmp.eq.s32.totalorder %s23, 0
      %p220 = por %p218, %p219
      %p221 = scmp.ne.s32.totalorder %s210, %s213
      %p222 = scmp.eq.s32.totalorder %s28, 1
      %p223 = por %p221, %p222
      %p224 = scmp.ne.s32.totalorder %s213, %s214
      %p225 = scmp.eq.s32.totalorder %s28, 0
      %p226 = por %p224, %p225
      %p227 = scmp.ne.s32.totalorder %s213, %s214
      %p228 = scmp.eq.s32.totalorder %s29, 1
      %p229 = por %p227, %p228
      %p231 = scmp.ne.s32.totalorder %s214, %s230
      %p232 = scmp.eq.s32.totalorder %s29, 0
      %p233 = por %p231, %p232
      %s234 = ssub.s32 %s23, %s30
      %p235 = scmp.eq.s32.totalorder %s234, 0
      %s237 = sadd.s32 %s236, 1
      %s238 = scalar_select %p235, %s236, %s237
      %p241 = pneg %p235
      %p242 = scmp.eq.s32.totalorder %s23, 1
      %p243 = por %p241, %p242
      %p244 = scmp.ne.s32.totalorder %s236, %s239
      %p245 = scmp.eq.s32.totalorder %s23, 0
      %p246 = por %p244, %p245
      %p247 = scmp.ne.s32.totalorder %s236, %s239
      %p248 = scmp.eq.s32.totalorder %s28, 1
      %p249 = por %p247, %p248
      %p250 = scmp.ne.s32.totalorder %s239, %s240
      %p251 = scmp.eq.s32.totalorder %s28, 0
      %p252 = por %p250, %p251
      %p253 = scmp.ne.s32.totalorder %s239, %s240
      %p254 = scmp.eq.s32.totalorder %s29, 1
      %p255 = por %p253, %p254
      %p257 = scmp.ne.s32.totalorder %s240, %s256
      %p258 = scmp.eq.s32.totalorder %s29, 0
      %p259 = por %p257, %p258
      %s260 = ssub.s32 %s23, %s30
      %p261 = scmp.eq.s32.totalorder %s260, 0
      %s263 = sadd.s32 %s262, 1
      %s264 = scalar_select %p261, %s262, %s263
      %p267 = pneg %p261
      %p268 = scmp.eq.s32.totalorder %s23, 1
      %p269 = por %p267, %p268
      %p270 = scmp.ne.s32.totalorder %s262, %s265
      %p271 = scmp.eq.s32.totalorder %s23, 0
      %p272 = por %p270, %p271
      %p273 = scmp.ne.s32.totalorder %s262, %s265
      %p274 = scmp.eq.s32.totalorder %s28, 1
      %p275 = por %p273, %p274
      %p276 = scmp.ne.s32.totalorder %s265, %s266
      %p277 = scmp.eq.s32.totalorder %s28, 0
      %p278 = por %p276, %p277
      %p279 = scmp.ne.s32.totalorder %s265, %s266
      %p280 = scmp.eq.s32.totalorder %s29, 1
      %p281 = por %p279, %p280
      %p283 = scmp.ne.s32.totalorder %s266, %s282
      %p284 = scmp.eq.s32.totalorder %s29, 0
      %p285 = por %p283, %p284
      %s286 = ssub.s32 %s23, %s30
      %p287 = scmp.eq.s32.totalorder %s286, 0
      %s289 = sadd.s32 %s288, 1
      %s290 = scalar_select %p287, %s288, %s289
      %p293 = pneg %p287
      %p294 = scmp.eq.s32.totalorder %s23, 1
      %p295 = por %p293, %p294
      %p296 = scmp.ne.s32.totalorder %s288, %s291
      %p297 = scmp.eq.s32.totalorder %s23, 0
      %p298 = por %p296, %p297
      %p299 = scmp.ne.s32.totalorder %s288, %s291
      %p300 = scmp.eq.s32.totalorder %s28, 1
      %p301 = por %p299, %p300
      %p302 = scmp.ne.s32.totalorder %s291, %s292
      %p303 = scmp.eq.s32.totalorder %s28, 0
      %p304 = por %p302, %p303
      %p305 = scmp.ne.s32.totalorder %s291, %s292
      %p306 = scmp.eq.s32.totalorder %s29, 1
      %p307 = por %p305, %p306
      %p309 = scmp.ne.s32.totalorder %s292, %s308
      %p310 = scmp.eq.s32.totalorder %s29, 0
      %p311 = por %p309, %p310
      %s312 = ssub.s32 %s23, %s30
      %p313 = scmp.eq.s32.totalorder %s312, 0
      %s315 = sadd.s32 %s314, 1
      %s316 = scalar_select %p313, %s314, %s315
      %p319 = pneg %p313
      %p320 = scmp.eq.s32.totalorder %s23, 1
      %p321 = por %p319, %p320
      %p322 = scmp.ne.s32.totalorder %s314, %s317
      %p323 = scmp.eq.s32.totalorder %s23, 0
      %p324 = por %p322, %p323
      %p325 = scmp.ne.s32.totalorder %s314, %s317
      %p326 = scmp.eq.s32.totalorder %s28, 1
      %p327 = por %p325, %p326
      %p328 = scmp.ne.s32.totalorder %s317, %s318
      %p329 = scmp.eq.s32.totalorder %s28, 0
      %p330 = por %p328, %p329
      %p331 = scmp.ne.s32.totalorder %s317, %s318
      %p332 = scmp.eq.s32.totalorder %s29, 1
      %p333 = por %p331, %p332
      %p335 = scmp.ne.s32.totalorder %s318, %s334
      %p336 = scmp.eq.s32.totalorder %s29, 0
      %p337 = por %p335, %p336
      %s338 = ssub.s32 %s23, %s30
      %p339 = scmp.eq.s32.totalorder %s338, 0
      %s341 = sadd.s32 %s340, 1
      %s342 = scalar_select %p339, %s340, %s341
      %p345 = pneg %p339
      %p346 = scmp.eq.s32.totalorder %s23, 1
      %p347 = por %p345, %p346
      %p348 = scmp.ne.s32.totalorder %s340, %s343
      %p349 = scmp.eq.s32.totalorder %s23, 0
      %p350 = por %p348, %p349
      %p351 = scmp.ne.s32.totalorder %s340, %s343
      %p352 = scmp.eq.s32.totalorder %s28, 1
      %p353 = por %p351, %p352
      %p354 = scmp.ne.s32.totalorder %s343, %s344
      %p355 = scmp.eq.s32.totalorder %s28, 0
      %p356 = por %p354, %p355
      %p357 = scmp.ne.s32.totalorder %s343, %s344
      %p358 = scmp.eq.s32.totalorder %s29, 1
      %p359 = por %p357, %p358
      %p361 = scmp.ne.s32.totalorder %s344, %s360
      %p362 = scmp.eq.s32.totalorder %s29, 0
      %p363 = por %p361, %p362
      %s365 = sadd.s32 %s364, 1
      %p368 = scmp.eq.s32.totalorder %s23, 1
      %p369 = scmp.ne.s32.totalorder %s364, %s366
      %p370 = scmp.eq.s32.totalorder %s23, 0
      %p371 = por %p369, %p370
      %p372 = scmp.ne.s32.totalorder %s364, %s366
      %p373 = scmp.eq.s32.totalorder %s28, 1
      %p374 = por %p372, %p373
      %p375 = scmp.ne.s32.totalorder %s366, %s367
      %p376 = scmp.eq.s32.totalorder %s28, 0
      %p377 = por %p375, %p376
      %p378 = scmp.ne.s32.totalorder %s366, %s367
      %p379 = scmp.eq.s32.totalorder %s29, 1
      %p380 = por %p378, %p379
      %p382 = scmp.ne.s32.totalorder %s367, %s381
      %p383 = scmp.eq.s32.totalorder %s29, 0
      %p384 = por %p382, %p383
      %s386 = sadd.s32 %s385, 1
      %p389 = scmp.eq.s32.totalorder %s23, 1
      %p390 = scmp.ne.s32.totalorder %s385, %s387
      %p391 = scmp.eq.s32.totalorder %s23, 0
      %p392 = por %p390, %p391
      %p393 = scmp.ne.s32.totalorder %s385, %s387
      %p394 = scmp.eq.s32.totalorder %s28, 1
      %p395 = por %p393, %p394
      %p396 = scmp.ne.s32.totalorder %s387, %s388
      %p397 = scmp.eq.s32.totalorder %s28, 0
      %p398 = por %p396, %p397
      %p399 = scmp.ne.s32.totalorder %s387, %s388
      %p400 = scmp.eq.s32.totalorder %s29, 1
      %p401 = por %p399, %p400
      %p403 = scmp.ne.s32.totalorder %s388, %s402
      %p404 = scmp.eq.s32.totalorder %s29, 0
      %p405 = por %p403, %p404
      %s407 = sadd.s32 %s406, 1
      %p410 = scmp.eq.s32.totalorder %s23, 1
      %p411 = scmp.ne.s32.totalorder %s406, %s408
      %p412 = scmp.eq.s32.totalorder %s23, 0
      %p413 = por %p411, %p412
      %p414 = scmp.ne.s32.totalorder %s406, %s408
      %p415 = scmp.eq.s32.totalorder %s28, 1
      %p416 = por %p414, %p415
      %p417 = scmp.ne.s32.totalorder %s408, %s409
      %p418 = scmp.eq.s32.totalorder %s28, 0
      %p419 = por %p417, %p418
      %p420 = scmp.ne.s32.totalorder %s408, %s409
      %p421 = scmp.eq.s32.totalorder %s29, 1
      %p422 = por %p420, %p421
      %p424 = scmp.ne.s32.totalorder %s409, %s423
      %p425 = scmp.eq.s32.totalorder %s29, 0
      %p426 = por %p424, %p425
      %s428 = sadd.s32 %s427, 1
      %p431 = scmp.eq.s32.totalorder %s23, 1
      %p432 = scmp.ne.s32.totalorder %s427, %s429
      %p433 = scmp.eq.s32.totalorder %s23, 0
      %p434 = por %p432, %p433
      %p435 = scmp.ne.s32.totalorder %s427, %s429
      %p436 = scmp.eq.s32.totalorder %s28, 1
      %p437 = por %p435, %p436
      %p438 = scmp.ne.s32.totalorder %s429, %s430
      %p439 = scmp.eq.s32.totalorder %s28, 0
      %p440 = por %p438, %p439
      %p441 = scmp.ne.s32.totalorder %s429, %s430
      %p442 = scmp.eq.s32.totalorder %s29, 1
      %p443 = por %p441, %p442
      %p445 = scmp.ne.s32.totalorder %s430, %s444
      %p446 = scmp.eq.s32.totalorder %s29, 0
      %p447 = por %p445, %p446
      %p448 = scmp.le.s32.totalorder 1, %s23
      %p449 = scmp.lt.s32.totalorder %s23, 3
      %p450 = pnand %p448, %p449
      %p451 = pneg %p450
      // Predicated region
      $region9: #{stateful_zenz_forward.1} parent=5 // pred_check
        _
      $region10: #{stateful_zenz_forward.1} parent=5 // pred_check_branch
        %453 = sbr.rel (%p450) target = $region12
      $region11: #{stateful_zenz_forward.1} parent=5 // pred_region
        %s454 = ssub.s32 %s23, 1
        // Predicated region
        $region13: #{stateful_zenz_forward.1} parent=11 // pred_check
          %p455 = pneg %p44
        $region14: #{stateful_zenz_forward.1} parent=11 // pred_check_branch
          %457 = sbr.rel (%p455) target = $region16
        $region15: #{stateful_zenz_forward.1} parent=11 // pred_region
          _
        $region16: #{stateful_zenz_forward.1} parent=11 // pred_fallthru
          _
        // Predicated region
        $region17: #{stateful_zenz_forward.1} parent=11 // pred_check
          %p458 = pneg %p377
        $region18: #{stateful_zenz_forward.1} parent=11 // pred_check_branch
          %460 = sbr.rel (%p458) target = $region20
        $region19: #{stateful_zenz_forward.1} parent=11 // pred_region
          _
        $region20: #{stateful_zenz_forward.1} parent=11 // pred_fallthru
          _
        // Predicated region
        $region21: #{stateful_zenz_forward.1} parent=11 // pred_check
          %p461 = pneg %p398
        $region22: #{stateful_zenz_forward.1} parent=11 // pred_check_branch
          %463 = sbr.rel (%p461) target = $region24
        $region23: #{stateful_zenz_forward.1} parent=11 // pred_region
          _
        $region24: #{stateful_zenz_forward.1} parent=11 // pred_fallthru
          _
        // Predicated region
        $region25: #{stateful_zenz_forward.1} parent=11 // pred_check
          %p464 = pneg %p419
        $region26: #{stateful_zenz_forward.1} parent=11 // pred_check_branch
          %466 = sbr.rel (%p464) target = $region28
        $region27: #{stateful_zenz_forward.1} parent=11 // pred_region
          _
        $region28: #{stateful_zenz_forward.1} parent=11 // pred_fallthru
          _
      $region12: #{stateful_zenz_forward.1} parent=5 // pred_fallthru
        _
      %p467 = scmp.lt.s32.totalorder %s23, 2
      // Predicated region
      $region29: #{stateful_zenz_forward.1} parent=5 // pred_check
        %p468 = pneg %p467
      $region30: #{stateful_zenz_forward.1} parent=5 // pred_check_branch
        %470 = sbr.rel (%p468) target = $region32
      $region31: #{stateful_zenz_forward.1} parent=5 // pred_region
        // Predicated region
        $region33: #{stateful_zenz_forward.1} parent=31 // pred_check
          %p471 = pneg %p64
        $region34: #{stateful_zenz_forward.1} parent=31 // pred_check_branch
          %473 = sbr.rel (%p471) target = $region36
        $region35: #{stateful_zenz_forward.1} parent=31 // pred_region
          %p474 = scmp.lt.s32.totalorder %s23, 1
          %s475 = scalar_select %p474, %s23, 1
          %s476 = scalar_lea.vmem %s1, %s475
        $region36: #{stateful_zenz_forward.1} parent=31 // pred_fallthru
          _
        // Predicated region
        $region37: #{stateful_zenz_forward.1} parent=31 // pred_check
          %p477 = pneg %p90
        $region38: #{stateful_zenz_forward.1} parent=31 // pred_check_branch
          %479 = sbr.rel (%p477) target = $region40
        $region39: #{stateful_zenz_forward.1} parent=31 // pred_region
          %p480 = scmp.lt.s32.totalorder %s23, 1
          %s481 = scalar_select %p480, %s23, 1
          %s482 = scalar_lea.vmem %s2, %s481
        $region40: #{stateful_zenz_forward.1} parent=31 // pred_fallthru
          _
        // Predicated region
        $region41: #{stateful_zenz_forward.1} parent=31 // pred_check
          %p483 = pneg %p116
        $region42: #{stateful_zenz_forward.1} parent=31 // pred_check_branch
          %485 = sbr.rel (%p483) target = $region44
        $region43: #{stateful_zenz_forward.1} parent=31 // pred_region
          %p486 = scmp.lt.s32.totalorder %s23, 1
          %s487 = scalar_select %p486, %s23, 1
          %s488 = smul.addr %s487, 4
          %s489 = smul.addr %s488, 8
          %s490 = scalar_lea.vmem %s3, %s489
        $region44: #{stateful_zenz_forward.1} parent=31 // pred_fallthru
          _
        // Predicated region
        $region45: #{stateful_zenz_forward.1} parent=31 // pred_check
          %p491 = pneg %p142
        $region46: #{stateful_zenz_forward.1} parent=31 // pred_check_branch
          %493 = sbr.rel (%p491) target = $region48
        $region47: #{stateful_zenz_forward.1} parent=31 // pred_region
          %p494 = scmp.lt.s32.totalorder %s23, 1
          %s495 = scalar_select %p494, %s23, 1
          %s496 = scalar_lea.vmem %s4, %s495
        $region48: #{stateful_zenz_forward.1} parent=31 // pred_fallthru
          _
        // Predicated region
        $region49: #{stateful_zenz_forward.1} parent=31 // pred_check
          %p497 = pneg %p168
        $region50: #{stateful_zenz_forward.1} parent=31 // pred_check_branch
          %499 = sbr.rel (%p497) target = $region52
        $region51: #{stateful_zenz_forward.1} parent=31 // pred_region
          %p500 = scmp.lt.s32.totalorder %s23, 1
          %s501 = scalar_select %p500, %s23, 1
          %s502 = smul.addr %s501, 4
          %s503 = smul.addr %s502, 8
          %s504 = scalar_lea.vmem %s5, %s503
        $region52: #{stateful_zenz_forward.1} parent=31 // pred_fallthru
          _
        // Predicated region
        $region53: #{stateful_zenz_forward.1} parent=31 // pred_check
          %p505 = pneg %p194
        $region54: #{stateful_zenz_forward.1} parent=31 // pred_check_branch
          %507 = sbr.rel (%p505) target = $region56
        $region55: #{stateful_zenz_forward.1} parent=31 // pred_region
          %p508 = scmp.lt.s32.totalorder %s23, 1
          %s509 = scalar_select %p508, %s23, 1
          %s510 = scalar_lea.vmem %s6, %s509
        $region56: #{stateful_zenz_forward.1} parent=31 // pred_fallthru
          _
        // Predicated region
        $region57: #{stateful_zenz_forward.1} parent=31 // pred_check
          %p511 = pneg %p220
        $region58: #{stateful_zenz_forward.1} parent=31 // pred_check_branch
          %513 = sbr.rel (%p511) target = $region60
        $region59: #{stateful_zenz_forward.1} parent=31 // pred_region
          %p514 = scmp.lt.s32.totalorder %s23, 1
          %s515 = scalar_select %p514, %s23, 1
          %s516 = scalar_lea.vmem %s7, %s515
        $region60: #{stateful_zenz_forward.1} parent=31 // pred_fallthru
          _
        // Predicated region
        $region61: #{stateful_zenz_forward.1} parent=31 // pred_check
          %p517 = pneg %p246
        $region62: #{stateful_zenz_forward.1} parent=31 // pred_check_branch
          %519 = sbr.rel (%p517) target = $region64
        $region63: #{stateful_zenz_forward.1} parent=31 // pred_region
          %p520 = scmp.lt.s32.totalorder %s23, 1
          %s521 = scalar_select %p520, %s23, 1
          %s522 = scalar_lea.vmem %s8, %s521
        $region64: #{stateful_zenz_forward.1} parent=31 // pred_fallthru
          _
        // Predicated region
        $region65: #{stateful_zenz_forward.1} parent=31 // pred_check
          %p523 = pneg %p272
        $region66: #{stateful_zenz_forward.1} parent=31 // pred_check_branch
          %525 = sbr.rel (%p523) target = $region68
        $region67: #{stateful_zenz_forward.1} parent=31 // pred_region
          %p526 = scmp.lt.s32.totalorder %s23, 1
          %s527 = scalar_select %p526, %s23, 1
          %s528 = smul.addr %s527, 4
          %s529 = smul.addr %s528, 8
          %s530 = scalar_lea.vmem %s9, %s529
        $region68: #{stateful_zenz_forward.1} parent=31 // pred_fallthru
          _
        // Predicated region
        $region69: #{stateful_zenz_forward.1} parent=31 // pred_check
          %p531 = pneg %p298
        $region70: #{stateful_zenz_forward.1} parent=31 // pred_check_branch
          %533 = sbr.rel (%p531) target = $region72
        $region71: #{stateful_zenz_forward.1} parent=31 // pred_region
          %p534 = scmp.lt.s32.totalorder %s23, 1
          %s535 = scalar_select %p534, %s23, 1
          %s536 = scalar_lea.vmem %s10, %s535
        $region72: #{stateful_zenz_forward.1} parent=31 // pred_fallthru
          _
        // Predicated region
        $region73: #{stateful_zenz_forward.1} parent=31 // pred_check
          %p537 = pneg %p324
        $region74: #{stateful_zenz_forward.1} parent=31 // pred_check_branch
          %539 = sbr.rel (%p537) target = $region76
        $region75: #{stateful_zenz_forward.1} parent=31 // pred_region
          %p540 = scmp.lt.s32.totalorder %s23, 1
          %s541 = scalar_select %p540, %s23, 1
          %s542 = smul.addr %s541, 16
          %s543 = smul.addr %s542, 8
          %s544 = scalar_lea.vmem %s11, %s543
        $region76: #{stateful_zenz_forward.1} parent=31 // pred_fallthru
          _
        // Predicated region
        $region77: #{stateful_zenz_forward.1} parent=31 // pred_check
          %p545 = pneg %p350
        $region78: #{stateful_zenz_forward.1} parent=31 // pred_check_branch
          %547 = sbr.rel (%p545) target = $region80
        $region79: #{stateful_zenz_forward.1} parent=31 // pred_region
          %p548 = scmp.lt.s32.totalorder %s23, 1
          %s549 = scalar_select %p548, %s23, 1
          %s550 = scalar_lea.vmem %s12, %s549
        $region80: #{stateful_zenz_forward.1} parent=31 // pred_fallthru
          _
      $region32: #{stateful_zenz_forward.1} parent=5 // pred_fallthru
        _
      %p551 = scmp.le.s32.totalorder 1, %s23
      %p552 = scmp.lt.s32.totalorder %s23, 3
      %p553 = pnand %p551, %p552
      %p554 = pneg %p553
      // Predicated region
      $region81: #{stateful_zenz_forward.1} parent=5 // pred_check
        _
      $region82: #{stateful_zenz_forward.1} parent=5 // pred_check_branch
        %556 = sbr.rel (%p553) target = $region84
      $region83: #{stateful_zenz_forward.1} parent=5 // pred_region
        %s557 = ssub.s32 %s23, 1
        %p558 = pneg %p44
        %p559 = pneg %p41
        %p560 = scmp.lt.s32.totalorder %s28, 1
        %s561 = scalar_select %p560, %s28, 1
        %s562 = scalar_lea.vmem %s1, %s561
        %p563 = pneg %p70
        %p564 = pneg %p67
        %p565 = scmp.lt.s32.totalorder %s28, 1
        %s566 = scalar_select %p565, %s28, 1
        %s567 = scalar_lea.vmem %s2, %s566
        %p568 = pneg %p96
        %p569 = pneg %p93
        %p570 = scmp.lt.s32.totalorder %s28, 1
        %s571 = scalar_select %p570, %s28, 1
        %s572 = smul.addr %s571, 4
        %s573 = smul.addr %s572, 8
        %s574 = scalar_lea.vmem %s3, %s573
        %p575 = pneg %p122
        %p576 = pneg %p119
        %p577 = scmp.lt.s32.totalorder %s28, 1
        %s578 = scalar_select %p577, %s28, 1
        %s579 = scalar_lea.vmem %s4, %s578
        %p580 = pneg %p148
        %p581 = pneg %p145
        %p582 = scmp.lt.s32.totalorder %s28, 1
        %s583 = scalar_select %p582, %s28, 1
        %s584 = smul.addr %s583, 4
        %s585 = smul.addr %s584, 8
        %s586 = scalar_lea.vmem %s5, %s585
        %p587 = pneg %p174
        %p588 = pneg %p171
        %p589 = scmp.lt.s32.totalorder %s28, 1
        %s590 = scalar_select %p589, %s28, 1
        %s591 = scalar_lea.vmem %s6, %s590
        %p592 = pneg %p200
        %p593 = pneg %p197
        %p594 = scmp.lt.s32.totalorder %s28, 1
        %s595 = scalar_select %p594, %s28, 1
        %s596 = scalar_lea.vmem %s7, %s595
        %p597 = pneg %p226
        %p598 = pneg %p223
        %p599 = scmp.lt.s32.totalorder %s28, 1
        %s600 = scalar_select %p599, %s28, 1
        %s601 = scalar_lea.vmem %s8, %s600
        %p602 = pneg %p252
        %p603 = pneg %p249
        %p604 = scmp.lt.s32.totalorder %s28, 1
        %s605 = scalar_select %p604, %s28, 1
        %s606 = smul.addr %s605, 4
        %s607 = smul.addr %s606, 8
        %s608 = scalar_lea.vmem %s9, %s607
        %p609 = pneg %p278
        %p610 = pneg %p275
        %p611 = scmp.lt.s32.totalorder %s28, 1
        %s612 = scalar_select %p611, %s28, 1
        %s613 = scalar_lea.vmem %s10, %s612
        %p614 = pneg %p304
        %p615 = pneg %p301
        %p616 = scmp.lt.s32.totalorder %s28, 1
        %s617 = scalar_select %p616, %s28, 1
        %s618 = smul.addr %s617, 16
        %s619 = smul.addr %s618, 8
        %s620 = scalar_lea.vmem %s11, %s619
        %p621 = pneg %p330
        %p622 = pneg %p327
        %p623 = scmp.lt.s32.totalorder %s28, 1
        %s624 = scalar_select %p623, %s28, 1
        %s625 = scalar_lea.vmem %s12, %s624
        %p626 = pneg %p356
        %p627 = pneg %p353
        %p628 = pneg %p377
        %p629 = pneg %p374
        %p630 = pneg %p398
        %p631 = pneg %p395
        %p632 = pneg %p419
        %p633 = pneg %p416
        %p634 = pneg %p440
        %p635 = pneg %p437
        %p636 = scmp.lt.s32.totalorder %s28, 1
        %s637 = scalar_select %p636, %s28, 1
        %s638 = scalar_lea.vmem %s1, %s637
        %p639 = scmp.lt.s32.totalorder %s28, 1
        %s640 = scalar_select %p639, %s28, 1
        %s641 = scalar_lea.vmem %s2, %s640
        %p642 = scmp.lt.s32.totalorder %s28, 1
        %s643 = scalar_select %p642, %s28, 1
        %s644 = smul.addr %s643, 4
        %s645 = smul.addr %s644, 8
        %s646 = scalar_lea.vmem %s3, %s645
        %p647 = scmp.lt.s32.totalorder %s28, 1
        %s648 = scalar_select %p647, %s28, 1
        %s649 = scalar_lea.vmem %s4, %s648
        %p650 = scmp.lt.s32.totalorder %s28, 1
        %s651 = scalar_select %p650, %s28, 1
        %s652 = smul.addr %s651, 4
        %s653 = smul.addr %s652, 8
        %s654 = scalar_lea.vmem %s5, %s653
        %p655 = scmp.lt.s32.totalorder %s28, 1
        %s656 = scalar_select %p655, %s28, 1
        %s657 = scalar_lea.vmem %s6, %s656
        %p658 = scmp.lt.s32.totalorder %s28, 1
        %s659 = scalar_select %p658, %s28, 1
        %s660 = scalar_lea.vmem %s7, %s659
        %p661 = scmp.lt.s32.totalorder %s28, 1
        %s662 = scalar_select %p661, %s28, 1
        %s663 = scalar_lea.vmem %s8, %s662
        %p664 = scmp.lt.s32.totalorder %s28, 1
        %s665 = scalar_select %p664, %s28, 1
        %s666 = smul.addr %s665, 4
        %s667 = smul.addr %s666, 8
        %s668 = scalar_lea.vmem %s9, %s667
        %p669 = scmp.lt.s32.totalorder %s28, 1
        %s670 = scalar_select %p669, %s28, 1
        %s671 = scalar_lea.vmem %s10, %s670
        %p672 = scmp.lt.s32.totalorder %s28, 1
        %s673 = scalar_select %p672, %s28, 1
        %s674 = smul.addr %s673, 16
        %s675 = smul.addr %s674, 8
        %s676 = scalar_lea.vmem %s11, %s675
        %p677 = scmp.lt.s32.totalorder %s28, 1
        %s678 = scalar_select %p677, %s28, 1
        %s679 = scalar_lea.vmem %s12, %s678
        %p680 = scmp.eq.s32.totalorder %s28, 0
        // Predicated region
        $region85: #{stateful_zenz_forward.1} parent=83 // pred_check
          %p681 = pneg %p680
        $region86: #{stateful_zenz_forward.1} parent=83 // pred_check_branch
          %683 = sbr.rel (%p681) target = $region88
        $region87: #{stateful_zenz_forward.1} parent=83 // pred_region
          %v684 = vld [vmem:[%s0] sm:$0xff]
          %vm685 = vcmask 261120
          %686 = vst.msk [vmem:[#allocation2] sm:$0xff] %vm685, %v684
        $region88: #{stateful_zenz_forward.1} parent=83 // pred_fallthru
          _
        %v687 = vld [vmem:[#allocation2] sm:$0xff]
        %v688 = vld [vmem:[%s638] sm:$0x1]
        %v689 = vld [vmem:[%s641] sm:$0x1]
        %vm690 = vcmask 261120
        %v691 = vsel %vm690, %v687, 0.0
        %692 = vadd.xlane.f32.xlu0 %v691
        %v693 = vpop.xlane.xlu0 %692
        %v694 = vrcp.pop 32.0
        %v695 = vmul.f32 %v693, %v694
        %v696 = vsub.f32 %v687, %v695
        %v697 = vmul.f32 %v696, %v696
        %v698 = vsel %vm690, %v697, 0.0
        %699 = vadd.xlane.f32.xlu0 %v698
        %v700 = vpop.xlane.xlu0 %699
        %v701 = vmul.f32 %v700, %v694
        %v702 = vadd.f32 %v701, 1e-05
        %v703 = vrsqrt.pop %v702
        %v704 = vmul.f32 %v696, %v703
        %v706 = vlaneseq
        %v707 = vshrl.u32 %v706, 7
        %v708 = vsub.s32 0, %v707
        %v709 = vrot.slane %v688, %v708
        %v711 = vmul.f32 %v704, %v709
        %v713 = vlaneseq
        %v714 = vshrl.u32 %v713, 7
        %v715 = vsub.s32 0, %v714
        %v716 = vrot.slane %v689, %v715
        %v718 = vadd.f32 %v711, %v716
        %v719 = vld [vmem:[%s646] sm:$0xff]
        %v720 = vld [vmem:[%s646 + $0x8] sm:$0xff]
        %v721 = vld [vmem:[%s646 + $0x10] sm:$0xff]
        %v722 = vld [vmem:[%s646 + $0x18] sm:$0xff]
        %v723 = vld [vmem:[%s649] sm:$0x1]
        %v725 = vlaneseq
        %v726 = vshrl.u32 %v725, 7
        %v727 = vsub.s32 0, %v726
        %v728 = vrot.slane %v723, %v727
        %v731 = vsel %vm690, %v718, 0
        %733 = vmatprep.subr.mxu0 0.0
        %734 = vmatpush1.msra.mxu0 %v719
        %735 = vmatprep.subr.mxu0 0.0
        %736 = vmatpush1.msra.mxu0 %v720
        %737 = vmatprep.subr.mxu0 0.0
        %738 = vmatpush1.msra.mxu0 %v721
        %739 = vmatprep.subr.mxu0 0.0
        %740 = vmatpush1.msra.mxu0 %v722
        %741 = vmatprep.subr.mxu0 0.0
        %742 = vmatpush1.msra.mxu0 0.0
        %743 = vmatprep.subr.mxu0 0.0
        %744 = vmatpush1.msra.mxu0 0.0
        %745 = vmatprep.subr.mxu0 0.0
        %746 = vmatpush1.msra.mxu0 0.0
        %747 = vmatprep.subr.mxu0 0.0
        %748 = vmatpush1.msra.mxu0 0.0
        %749 = vmatprep.subr.mxu0 0.0
        %750 = vmatpush1.msra.mxu0 0.0
        %751 = vmatprep.subr.mxu0 0.0
        %752 = vmatpush1.msra.mxu0 0.0
        %753 = vmatprep.subr.mxu0 0.0
        %754 = vmatpush1.msra.mxu0 0.0
        %755 = vmatprep.subr.mxu0 0.0
        %756 = vmatpush1.msra.mxu0 0.0
        %757 = vmatprep.subr.mxu0 0.0
        %758 = vmatpush1.msra.mxu0 0.0
        %759 = vmatprep.subr.mxu0 0.0
        %760 = vmatpush1.msra.mxu0 0.0
        %761 = vmatprep.subr.mxu0 0.0
        %762 = vmatpush1.msra.mxu0 0.0
        %763 = vmatprep.subr.mxu0 0.0
        %764 = vmatpush1.msra.mxu0 0.0
        %765 = vmatprep.subr.mxu0 0.0
        %766 = vmatpush1.msra.mxu0 0.0
        %767 = vmatprep.subr.mxu0 0.0
        %768 = vmatpush1.msra.mxu0 0.0
        %769 = vmatprep.subr.mxu0 0.0
        %770 = vmatpush1.msra.mxu0 0.0
        %771 = vmatprep.subr.mxu0 0.0
        %772 = vmatpush1.msra.mxu0 0.0
        %773 = vmatprep.subr.mxu0 0.0
        %774 = vmatpush1.msra.mxu0 0.0
        %775 = vmatprep.subr.mxu0 0.0
        %776 = vmatpush1.msra.mxu0 0.0
        %777 = vmatprep.subr.mxu0 0.0
        %778 = vmatpush1.msra.mxu0 0.0
        %779 = vmatprep.subr.mxu0 0.0
        %780 = vmatpush1.msra.mxu0 0.0
        %781 = vmatprep.subr.mxu0 0.0
        %782 = vmatpush1.msra.mxu0 0.0
        %783 = vmatprep.subr.mxu0 0.0
        %784 = vmatpush1.msra.mxu0 0.0
        %785 = vmatprep.subr.mxu0 0.0
        %786 = vmatpush1.msra.mxu0 0.0
        %787 = vmatprep.subr.mxu0 0.0
        %788 = vmatpush1.msra.mxu0 0.0
        %789 = vmatprep.subr.mxu0 0.0
        %790 = vmatpush1.msra.mxu0 0.0
        %791 = vmatprep.subr.mxu0 0.0
        %792 = vmatpush1.msra.mxu0 0.0
        %793 = vmatprep.subr.mxu0 0.0
        %794 = vmatpush1.msra.mxu0 0.0
        %795 = vmatprep.subr.mxu0 0.0
        %796 = vmatpush1.msra.mxu0 0.0
        %797 = vmatprep.mubr.f32.mxu0 0.0
        %798 = vmatmul.mubr.f32.gmra.mrb[0].mxu0 %v731
        %v799 = vpop.f32.mrb[0].mxu0
        %v800 = vadd.f32 %v728, %v799
        %v801 = vpop.f32.mrb[0].mxu0
        %802 = vdwg.mxu0
        %v803 = vmul.f32 %v800, 0.35355338
        %v804 = vlaneseq
        %v805 = vshrl.u32 %v804, 7
        %v806 = vlaneseq
        %v807 = vand.u32 %v806, 127
        %vm808 = vcmp.le.s32.totalorder %v807, %v805
        %v809 = vld [vmem:[%s654] sm:$0xff]
        %v810 = vld [vmem:[%s654 + $0x8] sm:$0xff]
        %v811 = vld [vmem:[%s654 + $0x10] sm:$0xff]
        %v812 = vld [vmem:[%s654 + $0x18] sm:$0xff]
        %v813 = vld [vmem:[%s657] sm:$0x1]
        %v815 = vlaneseq
        %v816 = vshrl.u32 %v815, 7
        %v817 = vsub.s32 0, %v816
        %v818 = vrot.slane %v813, %v817
        %821 = vrot.lane.b32.xlu0 %v800, 96
        %v822 = vpop.permute.xlu0 %821
        %vm823 = vcmask 64512
        %v825 = vsel %vm823, %v803, 0
        %v827 = vsel %vm823, %v822, 0
        %829 = vmatprep.subr.mxu0 0.0
        %830 = vmatpush1.xpose.msra.mxu0 %v827
        %831 = vmatprep.subr.mxu0 0.0
        %832 = vmatpush1.xpose.msra.mxu0 0.0
        %833 = vmatprep.subr.mxu0 0.0
        %834 = vmatpush1.xpose.msra.mxu0 0.0
        %835 = vmatprep.subr.mxu0 0.0
        %836 = vmatpush1.xpose.msra.mxu0 0.0
        %837 = vmatprep.subr.mxu0 0.0
        %838 = vmatpush1.xpose.msra.mxu0 0.0
        %839 = vmatprep.subr.mxu0 0.0
        %840 = vmatpush1.xpose.msra.mxu0 0.0
        %841 = vmatprep.subr.mxu0 0.0
        %842 = vmatpush1.xpose.msra.mxu0 0.0
        %843 = vmatprep.subr.mxu0 0.0
        %844 = vmatpush1.xpose.msra.mxu0 0.0
        %845 = vmatprep.subr.mxu0 0.0
        %846 = vmatpush1.xpose.msra.mxu0 0.0
        %847 = vmatprep.subr.mxu0 0.0
        %848 = vmatpush1.xpose.msra.mxu0 0.0
        %849 = vmatprep.subr.mxu0 0.0
        %850 = vmatpush1.xpose.msra.mxu0 0.0
        %851 = vmatprep.subr.mxu0 0.0
        %852 = vmatpush1.xpose.msra.mxu0 0.0
        %853 = vmatprep.subr.mxu0 0.0
        %854 = vmatpush1.xpose.msra.mxu0 0.0
        %855 = vmatprep.subr.mxu0 0.0
        %856 = vmatpush1.xpose.msra.mxu0 0.0
        %857 = vmatprep.subr.mxu0 0.0
        %858 = vmatpush1.xpose.msra.mxu0 0.0
        %859 = vmatprep.subr.mxu0 0.0
        %860 = vmatpush1.xpose.msra.mxu0 0.0
        %861 = vmatprep.subr.mxu0 0.0
        %862 = vmatpush1.xpose.msra.mxu0 0.0
        %863 = vmatprep.subr.mxu0 0.0
        %864 = vmatpush1.xpose.msra.mxu0 0.0
        %865 = vmatprep.subr.mxu0 0.0
        %866 = vmatpush1.xpose.msra.mxu0 0.0
        %867 = vmatprep.subr.mxu0 0.0
        %868 = vmatpush1.xpose.msra.mxu0 0.0
        %869 = vmatprep.subr.mxu0 0.0
        %870 = vmatpush1.xpose.msra.mxu0 0.0
        %871 = vmatprep.subr.mxu0 0.0
        %872 = vmatpush1.xpose.msra.mxu0 0.0
        %873 = vmatprep.subr.mxu0 0.0
        %874 = vmatpush1.xpose.msra.mxu0 0.0
        %875 = vmatprep.subr.mxu0 0.0
        %876 = vmatpush1.xpose.msra.mxu0 0.0
        %877 = vmatprep.subr.mxu0 0.0
        %878 = vmatpush1.xpose.msra.mxu0 0.0
        %879 = vmatprep.subr.mxu0 0.0
        %880 = vmatpush1.xpose.msra.mxu0 0.0
        %881 = vmatprep.subr.mxu0 0.0
        %882 = vmatpush1.xpose.msra.mxu0 0.0
        %883 = vmatprep.subr.mxu0 0.0
        %884 = vmatpush1.xpose.msra.mxu0 0.0
        %885 = vmatprep.subr.mxu0 0.0
        %886 = vmatpush1.xpose.msra.mxu0 0.0
        %887 = vmatprep.subr.mxu0 0.0
        %888 = vmatpush1.xpose.msra.mxu0 0.0
        %889 = vmatprep.subr.mxu0 0.0
        %890 = vmatpush1.xpose.msra.mxu0 0.0
        %891 = vmatprep.subr.mxu0 0.0
        %892 = vmatpush1.xpose.msra.mxu0 0.0
        %893 = vmatprep.mubr.f32.mxu0 0.0
        %894 = vmatmul.mubr.f32.gmra.mrb[0].mxu0 %v825
        %v895 = vpop.f32.mrb[0].mxu0
        %v896 = vadd.f32 0.0, %v895
        %v897 = vpop.f32.mrb[0].mxu0
        %898 = vdwg.mxu0
        %v899 = vsel %vm808, %v896, -3.4028235e+38
        %v900 = vsel %vm823, %v899, -inf
        %901 = vmax.xlane.f32.xlu0 %v900
        %v902 = vpop.xlane.xlu0 %901
        %v903 = vmax.f32 %v902, 0.0
        %v904 = vsub.f32 %v899, %v903
        %v905 = vmul.f32 %v904, 1.442695
        %v906 = vpow.pop %v905
        %v907 = vsel %vm823, %v906, 0.0
        %908 = vadd.xlane.f32.xlu0 %v907
        %v909 = vpop.xlane.xlu0 %908
        %v910 = vsub.f32 0.0, %v903
        %v911 = vmul.f32 %v910, 1.442695
        %v912 = vpow.pop %v911
        %v913 = vmul.f32 %v912, 16.0
        %v914 = vadd.f32 %v909, %v913
        %v915 = vrcp.pop %v914
        %v916 = vmul.f32 1.0, %v915
        %917 = vrot.lane.b32.xlu0 %v800, 64
        %v918 = vpop.permute.xlu0 %917
        %v921 = vsel %vm823, %v906, 0
        %923 = vmatprep.subr.mxu0 0.0
        %924 = vmatpush1.msra.mxu0 %v918
        %925 = vmatprep.subr.mxu0 0.0
        %926 = vmatpush1.msra.mxu0 0.0
        %927 = vmatprep.subr.mxu0 0.0
        %928 = vmatpush1.msra.mxu0 0.0
        %929 = vmatprep.subr.mxu0 0.0
        %930 = vmatpush1.msra.mxu0 0.0
        %931 = vmatprep.subr.mxu0 0.0
        %932 = vmatpush1.msra.mxu0 0.0
        %933 = vmatprep.subr.mxu0 0.0
        %934 = vmatpush1.msra.mxu0 0.0
        %935 = vmatprep.subr.mxu0 0.0
        %936 = vmatpush1.msra.mxu0 0.0
        %937 = vmatprep.subr.mxu0 0.0
        %938 = vmatpush1.msra.mxu0 0.0
        %939 = vmatprep.subr.mxu0 0.0
        %940 = vmatpush1.msra.mxu0 0.0
        %941 = vmatprep.subr.mxu0 0.0
        %942 = vmatpush1.msra.mxu0 0.0
        %943 = vmatprep.subr.mxu0 0.0
        %944 = vmatpush1.msra.mxu0 0.0
        %945 = vmatprep.subr.mxu0 0.0
        %946 = vmatpush1.msra.mxu0 0.0
        %947 = vmatprep.subr.mxu0 0.0
        %948 = vmatpush1.msra.mxu0 0.0
        %949 = vmatprep.subr.mxu0 0.0
        %950 = vmatpush1.msra.mxu0 0.0
        %951 = vmatprep.subr.mxu0 0.0
        %952 = vmatpush1.msra.mxu0 0.0
        %953 = vmatprep.subr.mxu0 0.0
        %954 = vmatpush1.msra.mxu0 0.0
        %955 = vmatprep.subr.mxu0 0.0
        %956 = vmatpush1.msra.mxu0 0.0
        %957 = vmatprep.subr.mxu0 0.0
        %958 = vmatpush1.msra.mxu0 0.0
        %959 = vmatprep.subr.mxu0 0.0
        %960 = vmatpush1.msra.mxu0 0.0
        %961 = vmatprep.subr.mxu0 0.0
        %962 = vmatpush1.msra.mxu0 0.0
        %963 = vmatprep.subr.mxu0 0.0
        %964 = vmatpush1.msra.mxu0 0.0
        %965 = vmatprep.subr.mxu0 0.0
        %966 = vmatpush1.msra.mxu0 0.0
        %967 = vmatprep.subr.mxu0 0.0
        %968 = vmatpush1.msra.mxu0 0.0
        %969 = vmatprep.subr.mxu0 0.0
        %970 = vmatpush1.msra.mxu0 0.0
        %971 = vmatprep.subr.mxu0 0.0
        %972 = vmatpush1.msra.mxu0 0.0
        %973 = vmatprep.subr.mxu0 0.0
        %974 = vmatpush1.msra.mxu0 0.0
        %975 = vmatprep.subr.mxu0 0.0
        %976 = vmatpush1.msra.mxu0 0.0
        %977 = vmatprep.subr.mxu0 0.0
        %978 = vmatpush1.msra.mxu0 0.0
        %979 = vmatprep.subr.mxu0 0.0
        %980 = vmatpush1.msra.mxu0 0.0
        %981 = vmatprep.subr.mxu0 0.0
        %982 = vmatpush1.msra.mxu0 0.0
        %983 = vmatprep.subr.mxu0 0.0
        %984 = vmatpush1.msra.mxu0 0.0
        %985 = vmatprep.subr.mxu0 0.0
        %986 = vmatpush1.msra.mxu0 0.0
        %987 = vmatprep.mubr.f32.mxu0 0.0
        %988 = vmatmul.mubr.f32.gmra.mrb[0].mxu0 %v921
        %v989 = vpop.f32.mrb[0].mxu0
        %v990 = vadd.f32 0.0, %v989
        %v991 = vpop.f32.mrb[0].mxu0
        %992 = vdwg.mxu0
        %v993 = vmul.f32 %v990, %v916
        %v995 = vsel %vm823, %v993, 0
        %997 = vmatprep.subr.mxu0 0.0
        %998 = vmatpush1.msra.mxu0 %v809
        %999 = vmatprep.subr.mxu0 0.0
        %1000 = vmatpush1.msra.mxu0 0.0
        %1001 = vmatprep.subr.mxu0 0.0
        %1002 = vmatpush1.msra.mxu0 0.0
        %1003 = vmatprep.subr.mxu0 0.0
        %1004 = vmatpush1.msra.mxu0 0.0
        %1005 = vmatprep.subr.mxu0 0.0
        %1006 = vmatpush1.msra.mxu0 0.0
        %1007 = vmatprep.subr.mxu0 0.0
        %1008 = vmatpush1.msra.mxu0 0.0
        %1009 = vmatprep.subr.mxu0 0.0
        %1010 = vmatpush1.msra.mxu0 0.0
        %1011 = vmatprep.subr.mxu0 0.0
        %1012 = vmatpush1.msra.mxu0 0.0
        %1013 = vmatprep.subr.mxu0 0.0
        %1014 = vmatpush1.msra.mxu0 0.0
        %1015 = vmatprep.subr.mxu0 0.0
        %1016 = vmatpush1.msra.mxu0 0.0
        %1017 = vmatprep.subr.mxu0 0.0
        %1018 = vmatpush1.msra.mxu0 0.0
        %1019 = vmatprep.subr.mxu0 0.0
        %1020 = vmatpush1.msra.mxu0 0.0
        %1021 = vmatprep.subr.mxu0 0.0
        %1022 = vmatpush1.msra.mxu0 0.0
        %1023 = vmatprep.subr.mxu0 0.0
        %1024 = vmatpush1.msra.mxu0 0.0
        %1025 = vmatprep.subr.mxu0 0.0
        %1026 = vmatpush1.msra.mxu0 0.0
        %1027 = vmatprep.subr.mxu0 0.0
        %1028 = vmatpush1.msra.mxu0 0.0
        %1029 = vmatprep.subr.mxu0 0.0
        %1030 = vmatpush1.msra.mxu0 0.0
        %1031 = vmatprep.subr.mxu0 0.0
        %1032 = vmatpush1.msra.mxu0 0.0
        %1033 = vmatprep.subr.mxu0 0.0
        %1034 = vmatpush1.msra.mxu0 0.0
        %1035 = vmatprep.subr.mxu0 0.0
        %1036 = vmatpush1.msra.mxu0 0.0
        %1037 = vmatprep.subr.mxu0 0.0
        %1038 = vmatpush1.msra.mxu0 0.0
        %1039 = vmatprep.subr.mxu0 0.0
        %1040 = vmatpush1.msra.mxu0 0.0
        %1041 = vmatprep.subr.mxu0 0.0
        %1042 = vmatpush1.msra.mxu0 0.0
        %1043 = vmatprep.subr.mxu0 0.0
        %1044 = vmatpush1.msra.mxu0 0.0
        %1045 = vmatprep.subr.mxu0 0.0
        %1046 = vmatpush1.msra.mxu0 0.0
        %1047 = vmatprep.subr.mxu0 0.0
        %1048 = vmatpush1.msra.mxu0 0.0
        %1049 = vmatprep.subr.mxu0 0.0
        %1050 = vmatpush1.msra.mxu0 0.0
        %1051 = vmatprep.subr.mxu0 0.0
        %1052 = vmatpush1.msra.mxu0 0.0
        %1053 = vmatprep.subr.mxu0 0.0
        %1054 = vmatpush1.msra.mxu0 0.0
        %1055 = vmatprep.subr.mxu0 0.0
        %1056 = vmatpush1.msra.mxu0 0.0
        %1057 = vmatprep.subr.mxu0 0.0
        %1058 = vmatpush1.msra.mxu0 0.0
        %1059 = vmatprep.subr.mxu0 0.0
        %1060 = vmatpush1.msra.mxu0 0.0
        %1061 = vmatprep.mubr.f32.mxu0 0.0
        %1062 = vmatmul.mubr.f32.gmra.mrb[0].mxu0 %v995
        %v1063 = vpop.f32.mrb[0].mxu0
        %v1064 = vadd.f32 0.0, %v1063
        %v1065 = vpop.f32.mrb[0].mxu0
        %1066 = vdwg.mxu0
        %v1067 = vadd.f32 %v818, %v1064
        %1068 = vrot.lane.b32.xlu0 %v803, 120
        %v1069 = vpop.permute.xlu0 %1068
        %1070 = vrot.lane.b32.xlu0 %v800, 88
        %v1071 = vpop.permute.xlu0 %1070
        %v1072 = vsel %vm823, %v1069, 0
        %v1074 = vsel %vm823, %v1071, 0
        %1076 = vmatprep.subr.mxu0 0.0
        %1077 = vmatpush1.xpose.msra.mxu0 %v1074
        %1078 = vmatprep.subr.mxu0 0.0
        %1079 = vmatpush1.xpose.msra.mxu0 0.0
        %1080 = vmatprep.subr.mxu0 0.0
        %1081 = vmatpush1.xpose.msra.mxu0 0.0
        %1082 = vmatprep.subr.mxu0 0.0
        %1083 = vmatpush1.xpose.msra.mxu0 0.0
        %1084 = vmatprep.subr.mxu0 0.0
        %1085 = vmatpush1.xpose.msra.mxu0 0.0
        %1086 = vmatprep.subr.mxu0 0.0
        %1087 = vmatpush1.xpose.msra.mxu0 0.0
        %1088 = vmatprep.subr.mxu0 0.0
        %1089 = vmatpush1.xpose.msra.mxu0 0.0
        %1090 = vmatprep.subr.mxu0 0.0
        %1091 = vmatpush1.xpose.msra.mxu0 0.0
        %1092 = vmatprep.subr.mxu0 0.0
        %1093 = vmatpush1.xpose.msra.mxu0 0.0
        %1094 = vmatprep.subr.mxu0 0.0
        %1095 = vmatpush1.xpose.msra.mxu0 0.0
        %1096 = vmatprep.subr.mxu0 0.0
        %1097 = vmatpush1.xpose.msra.mxu0 0.0
        %1098 = vmatprep.subr.mxu0 0.0
        %1099 = vmatpush1.xpose.msra.mxu0 0.0
        %1100 = vmatprep.subr.mxu0 0.0
        %1101 = vmatpush1.xpose.msra.mxu0 0.0
        %1102 = vmatprep.subr.mxu0 0.0
        %1103 = vmatpush1.xpose.msra.mxu0 0.0
        %1104 = vmatprep.subr.mxu0 0.0
        %1105 = vmatpush1.xpose.msra.mxu0 0.0
        %1106 = vmatprep.subr.mxu0 0.0
        %1107 = vmatpush1.xpose.msra.mxu0 0.0
        %1108 = vmatprep.subr.mxu0 0.0
        %1109 = vmatpush1.xpose.msra.mxu0 0.0
        %1110 = vmatprep.subr.mxu0 0.0
        %1111 = vmatpush1.xpose.msra.mxu0 0.0
        %1112 = vmatprep.subr.mxu0 0.0
        %1113 = vmatpush1.xpose.msra.mxu0 0.0
        %1114 = vmatprep.subr.mxu0 0.0
        %1115 = vmatpush1.xpose.msra.mxu0 0.0
        %1116 = vmatprep.subr.mxu0 0.0
        %1117 = vmatpush1.xpose.msra.mxu0 0.0
        %1118 = vmatprep.subr.mxu0 0.0
        %1119 = vmatpush1.xpose.msra.mxu0 0.0
        %1120 = vmatprep.subr.mxu0 0.0
        %1121 = vmatpush1.xpose.msra.mxu0 0.0
        %1122 = vmatprep.subr.mxu0 0.0
        %1123 = vmatpush1.xpose.msra.mxu0 0.0
        %1124 = vmatprep.subr.mxu0 0.0
        %1125 = vmatpush1.xpose.msra.mxu0 0.0
        %1126 = vmatprep.subr.mxu0 0.0
        %1127 = vmatpush1.xpose.msra.mxu0 0.0
        %1128 = vmatprep.subr.mxu0 0.0
        %1129 = vmatpush1.xpose.msra.mxu0 0.0
        %1130 = vmatprep.subr.mxu0 0.0
        %1131 = vmatpush1.xpose.msra.mxu0 0.0
        %1132 = vmatprep.subr.mxu0 0.0
        %1133 = vmatpush1.xpose.msra.mxu0 0.0
        %1134 = vmatprep.subr.mxu0 0.0
        %1135 = vmatpush1.xpose.msra.mxu0 0.0
        %1136 = vmatprep.subr.mxu0 0.0
        %1137 = vmatpush1.xpose.msra.mxu0 0.0
        %1138 = vmatprep.subr.mxu0 0.0
        %1139 = vmatpush1.xpose.msra.mxu0 0.0
        %1140 = vmatprep.mubr.f32.mxu0 0.0
        %1141 = vmatmul.mubr.f32.gmra.mrb[0].mxu0 %v1072
        %v1142 = vpop.f32.mrb[0].mxu0
        %v1143 = vadd.f32 0.0, %v1142
        %v1144 = vpop.f32.mrb[0].mxu0
        %1145 = vdwg.mxu0
        %v1146 = vsel %vm808, %v1143, -3.4028235e+38
        %v1147 = vsel %vm823, %v1146, -inf
        %1148 = vmax.xlane.f32.xlu0 %v1147
        %v1149 = vpop.xlane.xlu0 %1148
        %v1150 = vmax.f32 %v1149, 0.0
        %v1151 = vsub.f32 %v1146, %v1150
        %v1152 = vmul.f32 %v1151, 1.442695
        %v1153 = vpow.pop %v1152
        %v1154 = vsel %vm823, %v1153, 0.0
        %1155 = vadd.xlane.f32.xlu0 %v1154
        %v1156 = vpop.xlane.xlu0 %1155
        %v1157 = vsub.f32 0.0, %v1150
        %v1158 = vmul.f32 %v1157, 1.442695
        %v1159 = vpow.pop %v1158
        %v1160 = vmul.f32 %v1159, 16.0
        %v1161 = vadd.f32 %v1156, %v1160
        %v1162 = vrcp.pop %v1161
        %v1163 = vmul.f32 1.0, %v1162
        %1164 = vrot.lane.b32.xlu0 %v800, 56
        %v1165 = vpop.permute.xlu0 %1164
        %v1168 = vsel %vm823, %v1153, 0
        %1170 = vmatprep.subr.mxu0 0.0
        %1171 = vmatpush1.msra.mxu0 %v1165
        %1172 = vmatprep.subr.mxu0 0.0
        %1173 = vmatpush1.msra.mxu0 0.0
        %1174 = vmatprep.subr.mxu0 0.0
        %1175 = vmatpush1.msra.mxu0 0.0
        %1176 = vmatprep.subr.mxu0 0.0
        %1177 = vmatpush1.msra.mxu0 0.0
        %1178 = vmatprep.subr.mxu0 0.0
        %1179 = vmatpush1.msra.mxu0 0.0
        %1180 = vmatprep.subr.mxu0 0.0
        %1181 = vmatpush1.msra.mxu0 0.0
        %1182 = vmatprep.subr.mxu0 0.0
        %1183 = vmatpush1.msra.mxu0 0.0
        %1184 = vmatprep.subr.mxu0 0.0
        %1185 = vmatpush1.msra.mxu0 0.0
        %1186 = vmatprep.subr.mxu0 0.0
        %1187 = vmatpush1.msra.mxu0 0.0
        %1188 = vmatprep.subr.mxu0 0.0
        %1189 = vmatpush1.msra.mxu0 0.0
        %1190 = vmatprep.subr.mxu0 0.0
        %1191 = vmatpush1.msra.mxu0 0.0
        %1192 = vmatprep.subr.mxu0 0.0
        %1193 = vmatpush1.msra.mxu0 0.0
        %1194 = vmatprep.subr.mxu0 0.0
        %1195 = vmatpush1.msra.mxu0 0.0
        %1196 = vmatprep.subr.mxu0 0.0
        %1197 = vmatpush1.msra.mxu0 0.0
        %1198 = vmatprep.subr.mxu0 0.0
        %1199 = vmatpush1.msra.mxu0 0.0
        %1200 = vmatprep.subr.mxu0 0.0
        %1201 = vmatpush1.msra.mxu0 0.0
        %1202 = vmatprep.subr.mxu0 0.0
        %1203 = vmatpush1.msra.mxu0 0.0
        %1204 = vmatprep.subr.mxu0 0.0
        %1205 = vmatpush1.msra.mxu0 0.0
        %1206 = vmatprep.subr.mxu0 0.0
        %1207 = vmatpush1.msra.mxu0 0.0
        %1208 = vmatprep.subr.mxu0 0.0
        %1209 = vmatpush1.msra.mxu0 0.0
        %1210 = vmatprep.subr.mxu0 0.0
        %1211 = vmatpush1.msra.mxu0 0.0
        %1212 = vmatprep.subr.mxu0 0.0
        %1213 = vmatpush1.msra.mxu0 0.0
        %1214 = vmatprep.subr.mxu0 0.0
        %1215 = vmatpush1.msra.mxu0 0.0
        %1216 = vmatprep.subr.mxu0 0.0
        %1217 = vmatpush1.msra.mxu0 0.0
        %1218 = vmatprep.subr.mxu0 0.0
        %1219 = vmatpush1.msra.mxu0 0.0
        %1220 = vmatprep.subr.mxu0 0.0
        %1221 = vmatpush1.msra.mxu0 0.0
        %1222 = vmatprep.subr.mxu0 0.0
        %1223 = vmatpush1.msra.mxu0 0.0
        %1224 = vmatprep.subr.mxu0 0.0
        %1225 = vmatpush1.msra.mxu0 0.0
        %1226 = vmatprep.subr.mxu0 0.0
        %1227 = vmatpush1.msra.mxu0 0.0
        %1228 = vmatprep.subr.mxu0 0.0
        %1229 = vmatpush1.msra.mxu0 0.0
        %1230 = vmatprep.subr.mxu0 0.0
        %1231 = vmatpush1.msra.mxu0 0.0
        %1232 = vmatprep.subr.mxu0 0.0
        %1233 = vmatpush1.msra.mxu0 0.0
        %1234 = vmatprep.mubr.f32.mxu0 0.0
        %1235 = vmatmul.mubr.f32.gmra.mrb[0].mxu0 %v1168
        %v1236 = vpop.f32.mrb[0].mxu0
        %v1237 = vadd.f32 0.0, %v1236
        %v1238 = vpop.f32.mrb[0].mxu0
        %1239 = vdwg.mxu0
        %v1240 = vmul.f32 %v1237, %v1163
        %v1242 = vsel %vm823, %v1240, 0
        %1244 = vmatprep.subr.mxu0 0.0
        %1245 = vmatpush1.msra.mxu0 %v810
        %1246 = vmatprep.subr.mxu0 0.0
        %1247 = vmatpush1.msra.mxu0 0.0
        %1248 = vmatprep.subr.mxu0 0.0
        %1249 = vmatpush1.msra.mxu0 0.0
        %1250 = vmatprep.subr.mxu0 0.0
        %1251 = vmatpush1.msra.mxu0 0.0
        %1252 = vmatprep.subr.mxu0 0.0
        %1253 = vmatpush1.msra.mxu0 0.0
        %1254 = vmatprep.subr.mxu0 0.0
        %1255 = vmatpush1.msra.mxu0 0.0
        %1256 = vmatprep.subr.mxu0 0.0
        %1257 = vmatpush1.msra.mxu0 0.0
        %1258 = vmatprep.subr.mxu0 0.0
        %1259 = vmatpush1.msra.mxu0 0.0
        %1260 = vmatprep.subr.mxu0 0.0
        %1261 = vmatpush1.msra.mxu0 0.0
        %1262 = vmatprep.subr.mxu0 0.0
        %1263 = vmatpush1.msra.mxu0 0.0
        %1264 = vmatprep.subr.mxu0 0.0
        %1265 = vmatpush1.msra.mxu0 0.0
        %1266 = vmatprep.subr.mxu0 0.0
        %1267 = vmatpush1.msra.mxu0 0.0
        %1268 = vmatprep.subr.mxu0 0.0
        %1269 = vmatpush1.msra.mxu0 0.0
        %1270 = vmatprep.subr.mxu0 0.0
        %1271 = vmatpush1.msra.mxu0 0.0
        %1272 = vmatprep.subr.mxu0 0.0
        %1273 = vmatpush1.msra.mxu0 0.0
        %1274 = vmatprep.subr.mxu0 0.0
        %1275 = vmatpush1.msra.mxu0 0.0
        %1276 = vmatprep.subr.mxu0 0.0
        %1277 = vmatpush1.msra.mxu0 0.0
        %1278 = vmatprep.subr.mxu0 0.0
        %1279 = vmatpush1.msra.mxu0 0.0
        %1280 = vmatprep.subr.mxu0 0.0
        %1281 = vmatpush1.msra.mxu0 0.0
        %1282 = vmatprep.subr.mxu0 0.0
        %1283 = vmatpush1.msra.mxu0 0.0
        %1284 = vmatprep.subr.mxu0 0.0
        %1285 = vmatpush1.msra.mxu0 0.0
        %1286 = vmatprep.subr.mxu0 0.0
        %1287 = vmatpush1.msra.mxu0 0.0
        %1288 = vmatprep.subr.mxu0 0.0
        %1289 = vmatpush1.msra.mxu0 0.0
        %1290 = vmatprep.subr.mxu0 0.0
        %1291 = vmatpush1.msra.mxu0 0.0
        %1292 = vmatprep.subr.mxu0 0.0
        %1293 = vmatpush1.msra.mxu0 0.0
        %1294 = vmatprep.subr.mxu0 0.0
        %1295 = vmatpush1.msra.mxu0 0.0
        %1296 = vmatprep.subr.mxu0 0.0
        %1297 = vmatpush1.msra.mxu0 0.0
        %1298 = vmatprep.subr.mxu0 0.0
        %1299 = vmatpush1.msra.mxu0 0.0
        %1300 = vmatprep.subr.mxu0 0.0
        %1301 = vmatpush1.msra.mxu0 0.0
        %1302 = vmatprep.subr.mxu0 0.0
        %1303 = vmatpush1.msra.mxu0 0.0
        %1304 = vmatprep.subr.mxu0 0.0
        %1305 = vmatpush1.msra.mxu0 0.0
        %1306 = vmatprep.subr.mxu0 0.0
        %1307 = vmatpush1.msra.mxu0 0.0
        %1308 = vmatprep.mubr.f32.mxu0 0.0
        %1309 = vmatmul.mubr.f32.gmra.mrb[0].mxu0 %v1242
        %v1310 = vpop.f32.mrb[0].mxu0
        %v1311 = vadd.f32 0.0, %v1310
        %v1312 = vpop.f32.mrb[0].mxu0
        %1313 = vdwg.mxu0
        %v1314 = vadd.f32 %v1067, %v1311
        %1315 = vrot.lane.b32.xlu0 %v803, 112
        %v1316 = vpop.permute.xlu0 %1315
        %1317 = vrot.lane.b32.xlu0 %v800, 80
        %v1318 = vpop.permute.xlu0 %1317
        %v1319 = vsel %vm823, %v1316, 0
        %v1321 = vsel %vm823, %v1318, 0
        %1323 = vmatprep.subr.mxu0 0.0
        %1324 = vmatpush1.xpose.msra.mxu0 %v1321
        %1325 = vmatprep.subr.mxu0 0.0
        %1326 = vmatpush1.xpose.msra.mxu0 0.0
        %1327 = vmatprep.subr.mxu0 0.0
        %1328 = vmatpush1.xpose.msra.mxu0 0.0
        %1329 = vmatprep.subr.mxu0 0.0
        %1330 = vmatpush1.xpose.msra.mxu0 0.0
        %1331 = vmatprep.subr.mxu0 0.0
        %1332 = vmatpush1.xpose.msra.mxu0 0.0
        %1333 = vmatprep.subr.mxu0 0.0
        %1334 = vmatpush1.xpose.msra.mxu0 0.0
        %1335 = vmatprep.subr.mxu0 0.0
        %1336 = vmatpush1.xpose.msra.mxu0 0.0
        %1337 = vmatprep.subr.mxu0 0.0
        %1338 = vmatpush1.xpose.msra.mxu0 0.0
        %1339 = vmatprep.subr.mxu0 0.0
        %1340 = vmatpush1.xpose.msra.mxu0 0.0
        %1341 = vmatprep.subr.mxu0 0.0
        %1342 = vmatpush1.xpose.msra.mxu0 0.0
        %1343 = vmatprep.subr.mxu0 0.0
        %1344 = vmatpush1.xpose.msra.mxu0 0.0
        %1345 = vmatprep.subr.mxu0 0.0
        %1346 = vmatpush1.xpose.msra.mxu0 0.0
        %1347 = vmatprep.subr.mxu0 0.0
        %1348 = vmatpush1.xpose.msra.mxu0 0.0
        %1349 = vmatprep.subr.mxu0 0.0
        %1350 = vmatpush1.xpose.msra.mxu0 0.0
        %1351 = vmatprep.subr.mxu0 0.0
        %1352 = vmatpush1.xpose.msra.mxu0 0.0
        %1353 = vmatprep.subr.mxu0 0.0
        %1354 = vmatpush1.xpose.msra.mxu0 0.0
        %1355 = vmatprep.subr.mxu0 0.0
        %1356 = vmatpush1.xpose.msra.mxu0 0.0
        %1357 = vmatprep.subr.mxu0 0.0
        %1358 = vmatpush1.xpose.msra.mxu0 0.0
        %1359 = vmatprep.subr.mxu0 0.0
        %1360 = vmatpush1.xpose.msra.mxu0 0.0
        %1361 = vmatprep.subr.mxu0 0.0
        %1362 = vmatpush1.xpose.msra.mxu0 0.0
        %1363 = vmatprep.subr.mxu0 0.0
        %1364 = vmatpush1.xpose.msra.mxu0 0.0
        %1365 = vmatprep.subr.mxu0 0.0
        %1366 = vmatpush1.xpose.msra.mxu0 0.0
        %1367 = vmatprep.subr.mxu0 0.0
        %1368 = vmatpush1.xpose.msra.mxu0 0.0
        %1369 = vmatprep.subr.mxu0 0.0
        %1370 = vmatpush1.xpose.msra.mxu0 0.0
        %1371 = vmatprep.subr.mxu0 0.0
        %1372 = vmatpush1.xpose.msra.mxu0 0.0
        %1373 = vmatprep.subr.mxu0 0.0
        %1374 = vmatpush1.xpose.msra.mxu0 0.0
        %1375 = vmatprep.subr.mxu0 0.0
        %1376 = vmatpush1.xpose.msra.mxu0 0.0
        %1377 = vmatprep.subr.mxu0 0.0
        %1378 = vmatpush1.xpose.msra.mxu0 0.0
        %1379 = vmatprep.subr.mxu0 0.0
        %1380 = vmatpush1.xpose.msra.mxu0 0.0
        %1381 = vmatprep.subr.mxu0 0.0
        %1382 = vmatpush1.xpose.msra.mxu0 0.0
        %1383 = vmatprep.subr.mxu0 0.0
        %1384 = vmatpush1.xpose.msra.mxu0 0.0
        %1385 = vmatprep.subr.mxu0 0.0
        %1386 = vmatpush1.xpose.msra.mxu0 0.0
        %1387 = vmatprep.mubr.f32.mxu0 0.0
        %1388 = vmatmul.mubr.f32.gmra.mrb[0].mxu0 %v1319
        %v1389 = vpop.f32.mrb[0].mxu0
        %v1390 = vadd.f32 0.0, %v1389
        %v1391 = vpop.f32.mrb[0].mxu0
        %1392 = vdwg.mxu0
        %v1393 = vsel %vm808, %v1390, -3.4028235e+38
        %v1394 = vsel %vm823, %v1393, -inf
        %1395 = vmax.xlane.f32.xlu0 %v1394
        %v1396 = vpop.xlane.xlu0 %1395
        %v1397 = vmax.f32 %v1396, 0.0
        %v1398 = vsub.f32 %v1393, %v1397
        %v1399 = vmul.f32 %v1398, 1.442695
        %v1400 = vpow.pop %v1399
        %v1401 = vsel %vm823, %v1400, 0.0
        %1402 = vadd.xlane.f32.xlu0 %v1401
        %v1403 = vpop.xlane.xlu0 %1402
        %v1404 = vsub.f32 0.0, %v1397
        %v1405 = vmul.f32 %v1404, 1.442695
        %v1406 = vpow.pop %v1405
        %v1407 = vmul.f32 %v1406, 16.0
        %v1408 = vadd.f32 %v1403, %v1407
        %v1409 = vrcp.pop %v1408
        %v1410 = vmul.f32 1.0, %v1409
        %1411 = vrot.lane.b32.xlu0 %v800, 48
        %v1412 = vpop.permute.xlu0 %1411
        %v1415 = vsel %vm823, %v1400, 0
        %1417 = vmatprep.subr.mxu0 0.0
        %1418 = vmatpush1.msra.mxu0 %v1412
        %1419 = vmatprep.subr.mxu0 0.0
        %1420 = vmatpush1.msra.mxu0 0.0
        %1421 = vmatprep.subr.mxu0 0.0
        %1422 = vmatpush1.msra.mxu0 0.0
        %1423 = vmatprep.subr.mxu0 0.0
        %1424 = vmatpush1.msra.mxu0 0.0
        %1425 = vmatprep.subr.mxu0 0.0
        %1426 = vmatpush1.msra.mxu0 0.0
        %1427 = vmatprep.subr.mxu0 0.0
        %1428 = vmatpush1.msra.mxu0 0.0
        %1429 = vmatprep.subr.mxu0 0.0
        %1430 = vmatpush1.msra.mxu0 0.0
        %1431 = vmatprep.subr.mxu0 0.0
        %1432 = vmatpush1.msra.mxu0 0.0
        %1433 = vmatprep.subr.mxu0 0.0
        %1434 = vmatpush1.msra.mxu0 0.0
        %1435 = vmatprep.subr.mxu0 0.0
        %1436 = vmatpush1.msra.mxu0 0.0
        %1437 = vmatprep.subr.mxu0 0.0
        %1438 = vmatpush1.msra.mxu0 0.0
        %1439 = vmatprep.subr.mxu0 0.0
        %1440 = vmatpush1.msra.mxu0 0.0
        %1441 = vmatprep.subr.mxu0 0.0
        %1442 = vmatpush1.msra.mxu0 0.0
        %1443 = vmatprep.subr.mxu0 0.0
        %1444 = vmatpush1.msra.mxu0 0.0
        %1445 = vmatprep.subr.mxu0 0.0
        %1446 = vmatpush1.msra.mxu0 0.0
        %1447 = vmatprep.subr.mxu0 0.0
        %1448 = vmatpush1.msra.mxu0 0.0
        %1449 = vmatprep.subr.mxu0 0.0
        %1450 = vmatpush1.msra.mxu0 0.0
        %1451 = vmatprep.subr.mxu0 0.0
        %1452 = vmatpush1.msra.mxu0 0.0
        %1453 = vmatprep.subr.mxu0 0.0
        %1454 = vmatpush1.msra.mxu0 0.0
        %1455 = vmatprep.subr.mxu0 0.0
        %1456 = vmatpush1.msra.mxu0 0.0
        %1457 = vmatprep.subr.mxu0 0.0
        %1458 = vmatpush1.msra.mxu0 0.0
        %1459 = vmatprep.subr.mxu0 0.0
        %1460 = vmatpush1.msra.mxu0 0.0
        %1461 = vmatprep.subr.mxu0 0.0
        %1462 = vmatpush1.msra.mxu0 0.0
        %1463 = vmatprep.subr.mxu0 0.0
        %1464 = vmatpush1.msra.mxu0 0.0
        %1465 = vmatprep.subr.mxu0 0.0
        %1466 = vmatpush1.msra.mxu0 0.0
        %1467 = vmatprep.subr.mxu0 0.0
        %1468 = vmatpush1.msra.mxu0 0.0
        %1469 = vmatprep.subr.mxu0 0.0
        %1470 = vmatpush1.msra.mxu0 0.0
        %1471 = vmatprep.subr.mxu0 0.0
        %1472 = vmatpush1.msra.mxu0 0.0
        %1473 = vmatprep.subr.mxu0 0.0
        %1474 = vmatpush1.msra.mxu0 0.0
        %1475 = vmatprep.subr.mxu0 0.0
        %1476 = vmatpush1.msra.mxu0 0.0
        %1477 = vmatprep.subr.mxu0 0.0
        %1478 = vmatpush1.msra.mxu0 0.0
        %1479 = vmatprep.subr.mxu0 0.0
        %1480 = vmatpush1.msra.mxu0 0.0
        %1481 = vmatprep.mubr.f32.mxu0 0.0
        %1482 = vmatmul.mubr.f32.gmra.mrb[0].mxu0 %v1415
        %v1483 = vpop.f32.mrb[0].mxu0
        %v1484 = vadd.f32 0.0, %v1483
        %v1485 = vpop.f32.mrb[0].mxu0
        %1486 = vdwg.mxu0
        %v1487 = vmul.f32 %v1484, %v1410
        %v1489 = vsel %vm823, %v1487, 0
        %1491 = vmatprep.subr.mxu0 0.0
        %1492 = vmatpush1.msra.mxu0 %v811
        %1493 = vmatprep.subr.mxu0 0.0
        %1494 = vmatpush1.msra.mxu0 0.0
        %1495 = vmatprep.subr.mxu0 0.0
        %1496 = vmatpush1.msra.mxu0 0.0
        %1497 = vmatprep.subr.mxu0 0.0
        %1498 = vmatpush1.msra.mxu0 0.0
        %1499 = vmatprep.subr.mxu0 0.0
        %1500 = vmatpush1.msra.mxu0 0.0
        %1501 = vmatprep.subr.mxu0 0.0
        %1502 = vmatpush1.msra.mxu0 0.0
        %1503 = vmatprep.subr.mxu0 0.0
        %1504 = vmatpush1.msra.mxu0 0.0
        %1505 = vmatprep.subr.mxu0 0.0
        %1506 = vmatpush1.msra.mxu0 0.0
        %1507 = vmatprep.subr.mxu0 0.0
        %1508 = vmatpush1.msra.mxu0 0.0
        %1509 = vmatprep.subr.mxu0 0.0
        %1510 = vmatpush1.msra.mxu0 0.0
        %1511 = vmatprep.subr.mxu0 0.0
        %1512 = vmatpush1.msra.mxu0 0.0
        %1513 = vmatprep.subr.mxu0 0.0
        %1514 = vmatpush1.msra.mxu0 0.0
        %1515 = vmatprep.subr.mxu0 0.0
        %1516 = vmatpush1.msra.mxu0 0.0
        %1517 = vmatprep.subr.mxu0 0.0
        %1518 = vmatpush1.msra.mxu0 0.0
        %1519 = vmatprep.subr.mxu0 0.0
        %1520 = vmatpush1.msra.mxu0 0.0
        %1521 = vmatprep.subr.mxu0 0.0
        %1522 = vmatpush1.msra.mxu0 0.0
        %1523 = vmatprep.subr.mxu0 0.0
        %1524 = vmatpush1.msra.mxu0 0.0
        %1525 = vmatprep.subr.mxu0 0.0
        %1526 = vmatpush1.msra.mxu0 0.0
        %1527 = vmatprep.subr.mxu0 0.0
        %1528 = vmatpush1.msra.mxu0 0.0
        %1529 = vmatprep.subr.mxu0 0.0
        %1530 = vmatpush1.msra.mxu0 0.0
        %1531 = vmatprep.subr.mxu0 0.0
        %1532 = vmatpush1.msra.mxu0 0.0
        %1533 = vmatprep.subr.mxu0 0.0
        %1534 = vmatpush1.msra.mxu0 0.0
        %1535 = vmatprep.subr.mxu0 0.0
        %1536 = vmatpush1.msra.mxu0 0.0
        %1537 = vmatprep.subr.mxu0 0.0
        %1538 = vmatpush1.msra.mxu0 0.0
        %1539 = vmatprep.subr.mxu0 0.0
        %1540 = vmatpush1.msra.mxu0 0.0
        %1541 = vmatprep.subr.mxu0 0.0
        %1542 = vmatpush1.msra.mxu0 0.0
        %1543 = vmatprep.subr.mxu0 0.0
        %1544 = vmatpush1.msra.mxu0 0.0
        %1545 = vmatprep.subr.mxu0 0.0
        %1546 = vmatpush1.msra.mxu0 0.0
        %1547 = vmatprep.subr.mxu0 0.0
        %1548 = vmatpush1.msra.mxu0 0.0
        %1549 = vmatprep.subr.mxu0 0.0
        %1550 = vmatpush1.msra.mxu0 0.0
        %1551 = vmatprep.subr.mxu0 0.0
        %1552 = vmatpush1.msra.mxu0 0.0
        %1553 = vmatprep.subr.mxu0 0.0
        %1554 = vmatpush1.msra.mxu0 0.0
        %1555 = vmatprep.mubr.f32.mxu0 0.0
        %1556 = vmatmul.mubr.f32.gmra.mrb[0].mxu0 %v1489
        %v1557 = vpop.f32.mrb[0].mxu0
        %v1558 = vadd.f32 0.0, %v1557
        %v1559 = vpop.f32.mrb[0].mxu0
        %1560 = vdwg.mxu0
        %v1561 = vadd.f32 %v1314, %v1558
        %1562 = vrot.lane.b32.xlu0 %v803, 104
        %v1563 = vpop.permute.xlu0 %1562
        %1564 = vrot.lane.b32.xlu0 %v800, 72
        %v1565 = vpop.permute.xlu0 %1564
        %v1566 = vsel %vm823, %v1563, 0
        %v1568 = vsel %vm823, %v1565, 0
        %1570 = vmatprep.subr.mxu0 0.0
        %1571 = vmatpush1.xpose.msra.mxu0 %v1568
        %1572 = vmatprep.subr.mxu0 0.0
        %1573 = vmatpush1.xpose.msra.mxu0 0.0
        %1574 = vmatprep.subr.mxu0 0.0
        %1575 = vmatpush1.xpose.msra.mxu0 0.0
        %1576 = vmatprep.subr.mxu0 0.0
        %1577 = vmatpush1.xpose.msra.mxu0 0.0
        %1578 = vmatprep.subr.mxu0 0.0
        %1579 = vmatpush1.xpose.msra.mxu0 0.0
        %1580 = vmatprep.subr.mxu0 0.0
        %1581 = vmatpush1.xpose.msra.mxu0 0.0
        %1582 = vmatprep.subr.mxu0 0.0
        %1583 = vmatpush1.xpose.msra.mxu0 0.0
        %1584 = vmatprep.subr.mxu0 0.0
        %1585 = vmatpush1.xpose.msra.mxu0 0.0
        %1586 = vmatprep.subr.mxu0 0.0
        %1587 = vmatpush1.xpose.msra.mxu0 0.0
        %1588 = vmatprep.subr.mxu0 0.0
        %1589 = vmatpush1.xpose.msra.mxu0 0.0
        %1590 = vmatprep.subr.mxu0 0.0
        %1591 = vmatpush1.xpose.msra.mxu0 0.0
        %1592 = vmatprep.subr.mxu0 0.0
        %1593 = vmatpush1.xpose.msra.mxu0 0.0
        %1594 = vmatprep.subr.mxu0 0.0
        %1595 = vmatpush1.xpose.msra.mxu0 0.0
        %1596 = vmatprep.subr.mxu0 0.0
        %1597 = vmatpush1.xpose.msra.mxu0 0.0
        %1598 = vmatprep.subr.mxu0 0.0
        %1599 = vmatpush1.xpose.msra.mxu0 0.0
        %1600 = vmatprep.subr.mxu0 0.0
        %1601 = vmatpush1.xpose.msra.mxu0 0.0
        %1602 = vmatprep.subr.mxu0 0.0
        %1603 = vmatpush1.xpose.msra.mxu0 0.0
        %1604 = vmatprep.subr.mxu0 0.0
        %1605 = vmatpush1.xpose.msra.mxu0 0.0
        %1606 = vmatprep.subr.mxu0 0.0
        %1607 = vmatpush1.xpose.msra.mxu0 0.0
        %1608 = vmatprep.subr.mxu0 0.0
        %1609 = vmatpush1.xpose.msra.mxu0 0.0
        %1610 = vmatprep.subr.mxu0 0.0
        %1611 = vmatpush1.xpose.msra.mxu0 0.0
        %1612 = vmatprep.subr.mxu0 0.0
        %1613 = vmatpush1.xpose.msra.mxu0 0.0
        %1614 = vmatprep.subr.mxu0 0.0
        %1615 = vmatpush1.xpose.msra.mxu0 0.0
        %1616 = vmatprep.subr.mxu0 0.0
        %1617 = vmatpush1.xpose.msra.mxu0 0.0
        %1618 = vmatprep.subr.mxu0 0.0
        %1619 = vmatpush1.xpose.msra.mxu0 0.0
        %1620 = vmatprep.subr.mxu0 0.0
        %1621 = vmatpush1.xpose.msra.mxu0 0.0
        %1622 = vmatprep.subr.mxu0 0.0
        %1623 = vmatpush1.xpose.msra.mxu0 0.0
        %1624 = vmatprep.subr.mxu0 0.0
        %1625 = vmatpush1.xpose.msra.mxu0 0.0
        %1626 = vmatprep.subr.mxu0 0.0
        %1627 = vmatpush1.xpose.msra.mxu0 0.0
        %1628 = vmatprep.subr.mxu0 0.0
        %1629 = vmatpush1.xpose.msra.mxu0 0.0
        %1630 = vmatprep.subr.mxu0 0.0
        %1631 = vmatpush1.xpose.msra.mxu0 0.0
        %1632 = vmatprep.subr.mxu0 0.0
        %1633 = vmatpush1.xpose.msra.mxu0 0.0
        %1634 = vmatprep.mubr.f32.mxu0 0.0
        %1635 = vmatmul.mubr.f32.gmra.mrb[0].mxu0 %v1566
        %v1636 = vpop.f32.mrb[0].mxu0
        %v1637 = vadd.f32 0.0, %v1636
        %v1638 = vpop.f32.mrb[0].mxu0
        %1639 = vdwg.mxu0
        %v1640 = vsel %vm808, %v1637, -3.4028235e+38
        %v1641 = vsel %vm823, %v1640, -inf
        %1642 = vmax.xlane.f32.xlu0 %v1641
        %v1643 = vpop.xlane.xlu0 %1642
        %v1644 = vmax.f32 %v1643, 0.0
        %v1645 = vsub.f32 %v1640, %v1644
        %v1646 = vmul.f32 %v1645, 1.442695
        %v1647 = vpow.pop %v1646
        %v1648 = vsel %vm823, %v1647, 0.0
        %1649 = vadd.xlane.f32.xlu0 %v1648
        %v1650 = vpop.xlane.xlu0 %1649
        %v1651 = vsub.f32 0.0, %v1644
        %v1652 = vmul.f32 %v1651, 1.442695
        %v1653 = vpow.pop %v1652
        %v1654 = vmul.f32 %v1653, 16.0
        %v1655 = vadd.f32 %v1650, %v1654
        %v1656 = vrcp.pop %v1655
        %v1657 = vmul.f32 1.0, %v1656
        %1658 = vrot.lane.b32.xlu0 %v800, 40
        %v1659 = vpop.permute.xlu0 %1658
        %v1662 = vsel %vm823, %v1647, 0
        %1664 = vmatprep.subr.mxu0 0.0
        %1665 = vmatpush1.msra.mxu0 %v1659
        %1666 = vmatprep.subr.mxu0 0.0
        %1667 = vmatpush1.msra.mxu0 0.0
        %1668 = vmatprep.subr.mxu0 0.0
        %1669 = vmatpush1.msra.mxu0 0.0
        %1670 = vmatprep.subr.mxu0 0.0
        %1671 = vmatpush1.msra.mxu0 0.0
        %1672 = vmatprep.subr.mxu0 0.0
        %1673 = vmatpush1.msra.mxu0 0.0
        %1674 = vmatprep.subr.mxu0 0.0
        %1675 = vmatpush1.msra.mxu0 0.0
        %1676 = vmatprep.subr.mxu0 0.0
        %1677 = vmatpush1.msra.mxu0 0.0
        %1678 = vmatprep.subr.mxu0 0.0
        %1679 = vmatpush1.msra.mxu0 0.0
        %1680 = vmatprep.subr.mxu0 0.0
        %1681 = vmatpush1.msra.mxu0 0.0
        %1682 = vmatprep.subr.mxu0 0.0
        %1683 = vmatpush1.msra.mxu0 0.0
        %1684 = vmatprep.subr.mxu0 0.0
        %1685 = vmatpush1.msra.mxu0 0.0
        %1686 = vmatprep.subr.mxu0 0.0
        %1687 = vmatpush1.msra.mxu0 0.0
        %1688 = vmatprep.subr.mxu0 0.0
        %1689 = vmatpush1.msra.mxu0 0.0
        %1690 = vmatprep.subr.mxu0 0.0
        %1691 = vmatpush1.msra.mxu0 0.0
        %1692 = vmatprep.subr.mxu0 0.0
        %1693 = vmatpush1.msra.mxu0 0.0
        %1694 = vmatprep.subr.mxu0 0.0
        %1695 = vmatpush1.msra.mxu0 0.0
        %1696 = vmatprep.subr.mxu0 0.0
        %1697 = vmatpush1.msra.mxu0 0.0
        %1698 = vmatprep.subr.mxu0 0.0
        %1699 = vmatpush1.msra.mxu0 0.0
        %1700 = vmatprep.subr.mxu0 0.0
        %1701 = vmatpush1.msra.mxu0 0.0
        %1702 = vmatprep.subr.mxu0 0.0
        %1703 = vmatpush1.msra.mxu0 0.0
        %1704 = vmatprep.subr.mxu0 0.0
        %1705 = vmatpush1.msra.mxu0 0.0
        %1706 = vmatprep.subr.mxu0 0.0
        %1707 = vmatpush1.msra.mxu0 0.0
        %1708 = vmatprep.subr.mxu0 0.0
        %1709 = vmatpush1.msra.mxu0 0.0
        %1710 = vmatprep.subr.mxu0 0.0
        %1711 = vmatpush1.msra.mxu0 0.0
        %1712 = vmatprep.subr.mxu0 0.0
        %1713 = vmatpush1.msra.mxu0 0.0
        %1714 = vmatprep.subr.mxu0 0.0
        %1715 = vmatpush1.msra.mxu0 0.0
        %1716 = vmatprep.subr.mxu0 0.0
        %1717 = vmatpush1.msra.mxu0 0.0
        %1718 = vmatprep.subr.mxu0 0.0
        %1719 = vmatpush1.msra.mxu0 0.0
        %1720 = vmatprep.subr.mxu0 0.0
        %1721 = vmatpush1.msra.mxu0 0.0
        %1722 = vmatprep.subr.mxu0 0.0
        %1723 = vmatpush1.msra.mxu0 0.0
        %1724 = vmatprep.subr.mxu0 0.0
        %1725 = vmatpush1.msra.mxu0 0.0
        %1726 = vmatprep.subr.mxu0 0.0
        %1727 = vmatpush1.msra.mxu0 0.0
        %1728 = vmatprep.mubr.f32.mxu0 0.0
        %1729 = vmatmul.mubr.f32.gmra.mrb[0].mxu0 %v1662
        %v1730 = vpop.f32.mrb[0].mxu0
        %v1731 = vadd.f32 0.0, %v1730
        %v1732 = vpop.f32.mrb[0].mxu0
        %1733 = vdwg.mxu0
        %v1734 = vmul.f32 %v1731, %v1657
        %v1736 = vsel %vm823, %v1734, 0
        %1738 = vmatprep.subr.mxu0 0.0
        %1739 = vmatpush1.msra.mxu0 %v812
        %1740 = vmatprep.subr.mxu0 0.0
        %1741 = vmatpush1.msra.mxu0 0.0
        %1742 = vmatprep.subr.mxu0 0.0
        %1743 = vmatpush1.msra.mxu0 0.0
        %1744 = vmatprep.subr.mxu0 0.0
        %1745 = vmatpush1.msra.mxu0 0.0
        %1746 = vmatprep.subr.mxu0 0.0
        %1747 = vmatpush1.msra.mxu0 0.0
        %1748 = vmatprep.subr.mxu0 0.0
        %1749 = vmatpush1.msra.mxu0 0.0
        %1750 = vmatprep.subr.mxu0 0.0
        %1751 = vmatpush1.msra.mxu0 0.0
        %1752 = vmatprep.subr.mxu0 0.0
        %1753 = vmatpush1.msra.mxu0 0.0
        %1754 = vmatprep.subr.mxu0 0.0
        %1755 = vmatpush1.msra.mxu0 0.0
        %1756 = vmatprep.subr.mxu0 0.0
        %1757 = vmatpush1.msra.mxu0 0.0
        %1758 = vmatprep.subr.mxu0 0.0
        %1759 = vmatpush1.msra.mxu0 0.0
        %1760 = vmatprep.subr.mxu0 0.0
        %1761 = vmatpush1.msra.mxu0 0.0
        %1762 = vmatprep.subr.mxu0 0.0
        %1763 = vmatpush1.msra.mxu0 0.0
        %1764 = vmatprep.subr.mxu0 0.0
        %1765 = vmatpush1.msra.mxu0 0.0
        %1766 = vmatprep.subr.mxu0 0.0
        %1767 = vmatpush1.msra.mxu0 0.0
        %1768 = vmatprep.subr.mxu0 0.0
        %1769 = vmatpush1.msra.mxu0 0.0
        %1770 = vmatprep.subr.mxu0 0.0
        %1771 = vmatpush1.msra.mxu0 0.0
        %1772 = vmatprep.subr.mxu0 0.0
        %1773 = vmatpush1.msra.mxu0 0.0
        %1774 = vmatprep.subr.mxu0 0.0
        %1775 = vmatpush1.msra.mxu0 0.0
        %1776 = vmatprep.subr.mxu0 0.0
        %1777 = vmatpush1.msra.mxu0 0.0
        %1778 = vmatprep.subr.mxu0 0.0
        %1779 = vmatpush1.msra.mxu0 0.0
        %1780 = vmatprep.subr.mxu0 0.0
        %1781 = vmatpush1.msra.mxu0 0.0
        %1782 = vmatprep.subr.mxu0 0.0
        %1783 = vmatpush1.msra.mxu0 0.0
        %1784 = vmatprep.subr.mxu0 0.0
        %1785 = vmatpush1.msra.mxu0 0.0
        %1786 = vmatprep.subr.mxu0 0.0
        %1787 = vmatpush1.msra.mxu0 0.0
        %1788 = vmatprep.subr.mxu0 0.0
        %1789 = vmatpush1.msra.mxu0 0.0
        %1790 = vmatprep.subr.mxu0 0.0
        %1791 = vmatpush1.msra.mxu0 0.0
        %1792 = vmatprep.subr.mxu0 0.0
        %1793 = vmatpush1.msra.mxu0 0.0
        %1794 = vmatprep.subr.mxu0 0.0
        %1795 = vmatpush1.msra.mxu0 0.0
        %1796 = vmatprep.subr.mxu0 0.0
        %1797 = vmatpush1.msra.mxu0 0.0
        %1798 = vmatprep.subr.mxu0 0.0
        %1799 = vmatpush1.msra.mxu0 0.0
        %1800 = vmatprep.subr.mxu0 0.0
        %1801 = vmatpush1.msra.mxu0 0.0
        %1802 = vmatprep.mubr.f32.mxu0 0.0
        %1803 = vmatmul.mubr.f32.gmra.mrb[0].mxu0 %v1736
        %v1804 = vpop.f32.mrb[0].mxu0
        %v1805 = vadd.f32 0.0, %v1804
        %v1806 = vpop.f32.mrb[0].mxu0
        %1807 = vdwg.mxu0
        %v1808 = vadd.f32 %v1561, %v1805
        %v1809 = vadd.f32 %v687, %v1808
        %v1810 = vld [vmem:[%s660] sm:$0x1]
        %v1811 = vld [vmem:[%s663] sm:$0x1]
        %v1812 = vsel %vm690, %v1809, 0.0
        %1813 = vadd.xlane.f32.xlu0 %v1812
        %v1814 = vpop.xlane.xlu0 %1813
        %v1815 = vmul.f32 %v1814, %v694
        %v1816 = vsub.f32 %v1809, %v1815
        %v1817 = vmul.f32 %v1816, %v1816
        %v1818 = vsel %vm690, %v1817, 0.0
        %1819 = vadd.xlane.f32.xlu0 %v1818
        %v1820 = vpop.xlane.xlu0 %1819
        %v1821 = vmul.f32 %v1820, %v694
        %v1822 = vadd.f32 %v1821, 1e-05
        %v1823 = vrsqrt.pop %v1822
        %v1824 = vmul.f32 %v1816, %v1823
        %v1826 = vlaneseq
        %v1827 = vshrl.u32 %v1826, 7
        %v1828 = vsub.s32 0, %v1827
        %v1829 = vrot.slane %v1810, %v1828
        %v1831 = vmul.f32 %v1824, %v1829
        %v1833 = vlaneseq
        %v1834 = vshrl.u32 %v1833, 7
        %v1835 = vsub.s32 0, %v1834
        %v1836 = vrot.slane %v1811, %v1835
        %v1838 = vadd.f32 %v1831, %v1836
        %v1839 = vld [vmem:[%s668] sm:$0xff]
        %v1840 = vld [vmem:[%s668 + $0x8] sm:$0xff]
        %v1841 = vld [vmem:[%s668 + $0x10] sm:$0xff]
        %v1842 = vld [vmem:[%s668 + $0x18] sm:$0xff]
        %v1843 = vld [vmem:[%s671] sm:$0x1]
        %v1845 = vlaneseq
        %v1846 = vshrl.u32 %v1845, 7
        %v1847 = vsub.s32 0, %v1846
        %v1848 = vrot.slane %v1843, %v1847
        %v1851 = vsel %vm690, %v1838, 0
        %1853 = vmatprep.subr.mxu0 0.0
        %1854 = vmatpush1.msra.mxu0 %v1839
        %1855 = vmatprep.subr.mxu0 0.0
        %1856 = vmatpush1.msra.mxu0 %v1840
        %1857 = vmatprep.subr.mxu0 0.0
        %1858 = vmatpush1.msra.mxu0 %v1841
        %1859 = vmatprep.subr.mxu0 0.0
        %1860 = vmatpush1.msra.mxu0 %v1842
        %1861 = vmatprep.subr.mxu0 0.0
        %1862 = vmatpush1.msra.mxu0 0.0
        %1863 = vmatprep.subr.mxu0 0.0
        %1864 = vmatpush1.msra.mxu0 0.0
        %1865 = vmatprep.subr.mxu0 0.0
        %1866 = vmatpush1.msra.mxu0 0.0
        %1867 = vmatprep.subr.mxu0 0.0
        %1868 = vmatpush1.msra.mxu0 0.0
        %1869 = vmatprep.subr.mxu0 0.0
        %1870 = vmatpush1.msra.mxu0 0.0
        %1871 = vmatprep.subr.mxu0 0.0
        %1872 = vmatpush1.msra.mxu0 0.0
        %1873 = vmatprep.subr.mxu0 0.0
        %1874 = vmatpush1.msra.mxu0 0.0
        %1875 = vmatprep.subr.mxu0 0.0
        %1876 = vmatpush1.msra.mxu0 0.0
        %1877 = vmatprep.subr.mxu0 0.0
        %1878 = vmatpush1.msra.mxu0 0.0
        %1879 = vmatprep.subr.mxu0 0.0
        %1880 = vmatpush1.msra.mxu0 0.0
        %1881 = vmatprep.subr.mxu0 0.0
        %1882 = vmatpush1.msra.mxu0 0.0
        %1883 = vmatprep.subr.mxu0 0.0
        %1884 = vmatpush1.msra.mxu0 0.0
        %1885 = vmatprep.subr.mxu0 0.0
        %1886 = vmatpush1.msra.mxu0 0.0
        %1887 = vmatprep.subr.mxu0 0.0
        %1888 = vmatpush1.msra.mxu0 0.0
        %1889 = vmatprep.subr.mxu0 0.0
        %1890 = vmatpush1.msra.mxu0 0.0
        %1891 = vmatprep.subr.mxu0 0.0
        %1892 = vmatpush1.msra.mxu0 0.0
        %1893 = vmatprep.subr.mxu0 0.0
        %1894 = vmatpush1.msra.mxu0 0.0
        %1895 = vmatprep.subr.mxu0 0.0
        %1896 = vmatpush1.msra.mxu0 0.0
        %1897 = vmatprep.subr.mxu0 0.0
        %1898 = vmatpush1.msra.mxu0 0.0
        %1899 = vmatprep.subr.mxu0 0.0
        %1900 = vmatpush1.msra.mxu0 0.0
        %1901 = vmatprep.subr.mxu0 0.0
        %1902 = vmatpush1.msra.mxu0 0.0
        %1903 = vmatprep.subr.mxu0 0.0
        %1904 = vmatpush1.msra.mxu0 0.0
        %1905 = vmatprep.subr.mxu0 0.0
        %1906 = vmatpush1.msra.mxu0 0.0
        %1907 = vmatprep.subr.mxu0 0.0
        %1908 = vmatpush1.msra.mxu0 0.0
        %1909 = vmatprep.subr.mxu0 0.0
        %1910 = vmatpush1.msra.mxu0 0.0
        %1911 = vmatprep.subr.mxu0 0.0
        %1912 = vmatpush1.msra.mxu0 0.0
        %1913 = vmatprep.subr.mxu0 0.0
        %1914 = vmatpush1.msra.mxu0 0.0
        %1915 = vmatprep.subr.mxu0 0.0
        %1916 = vmatpush1.msra.mxu0 0.0
        %1917 = vmatprep.mubr.f32.mxu0 0.0
        %1918 = vmatmul.mubr.f32.gmra.mrb[0].mxu0 %v1851
        %v1919 = vpop.f32.mrb[0].mxu0
        %v1920 = vadd.f32 %v1848, %v1919
        %v1921 = vpop.f32.mrb[0].mxu0
        %1922 = vdwg.mxu0
        %v1923 = vmul.f32 %v1920, 0.5
        %v1924 = vmul.f32 %v1920, 0.044715
        %v1925 = vmul.f32 %v1924, %v1920
        %v1926 = vmul.f32 %v1925, %v1920
        %v1927 = vadd.f32 %v1920, %v1926
        %v1928 = vmul.f32 %v1927, 0.7978846
        %v1929 = vtanh.pop %v1928
        %v1930 = vadd.f32 %v1929, 1.0
        %v1931 = vmul.f32 %v1923, %v1930
        %v1932 = vld [vmem:[%s676] sm:$0xff]
        %v1933 = vld [vmem:[%s676 + $0x8] sm:$0xff]
        %v1934 = vld [vmem:[%s676 + $0x10] sm:$0xff]
        %v1935 = vld [vmem:[%s676 + $0x18] sm:$0xff]
        %v1936 = vld [vmem:[%s676 + $0x20] sm:$0xff]
        %v1937 = vld [vmem:[%s676 + $0x28] sm:$0xff]
        %v1938 = vld [vmem:[%s676 + $0x30] sm:$0xff]
        %v1939 = vld [vmem:[%s676 + $0x38] sm:$0xff]
        %v1940 = vld [vmem:[%s676 + $0x40] sm:$0xff]
        %v1941 = vld [vmem:[%s676 + $0x48] sm:$0xff]
        %v1942 = vld [vmem:[%s676 + $0x50] sm:$0xff]
        %v1943 = vld [vmem:[%s676 + $0x58] sm:$0xff]
        %v1944 = vld [vmem:[%s676 + $0x60] sm:$0xff]
        %v1945 = vld [vmem:[%s676 + $0x68] sm:$0xff]
        %v1946 = vld [vmem:[%s676 + $0x70] sm:$0xff]
        %v1947 = vld [vmem:[%s676 + $0x78] sm:$0xff]
        %v1948 = vld [vmem:[%s679] sm:$0x1]
        %v1950 = vlaneseq
        %v1951 = vshrl.u32 %v1950, 7
        %v1952 = vsub.s32 0, %v1951
        %v1953 = vrot.slane %v1948, %v1952
        %1955 = vmatprep.subr.mxu0 0.0
        %1956 = vmatpush1.msra.mxu0 %v1932
        %1957 = vmatprep.subr.mxu0 0.0
        %1958 = vmatpush1.msra.mxu0 %v1933
        %1959 = vmatprep.subr.mxu0 0.0
        %1960 = vmatpush1.msra.mxu0 %v1934
        %1961 = vmatprep.subr.mxu0 0.0
        %1962 = vmatpush1.msra.mxu0 %v1935
        %1963 = vmatprep.subr.mxu0 0.0
        %1964 = vmatpush1.msra.mxu0 %v1936
        %1965 = vmatprep.subr.mxu0 0.0
        %1966 = vmatpush1.msra.mxu0 %v1937
        %1967 = vmatprep.subr.mxu0 0.0
        %1968 = vmatpush1.msra.mxu0 %v1938
        %1969 = vmatprep.subr.mxu0 0.0
        %1970 = vmatpush1.msra.mxu0 %v1939
        %1971 = vmatprep.subr.mxu0 0.0
        %1972 = vmatpush1.msra.mxu0 %v1940
        %1973 = vmatprep.subr.mxu0 0.0
        %1974 = vmatpush1.msra.mxu0 %v1941
        %1975 = vmatprep.subr.mxu0 0.0
        %1976 = vmatpush1.msra.mxu0 %v1942
        %1977 = vmatprep.subr.mxu0 0.0
        %1978 = vmatpush1.msra.mxu0 %v1943
        %1979 = vmatprep.subr.mxu0 0.0
        %1980 = vmatpush1.msra.mxu0 %v1944
        %1981 = vmatprep.subr.mxu0 0.0
        %1982 = vmatpush1.msra.mxu0 %v1945
        %1983 = vmatprep.subr.mxu0 0.0
        %1984 = vmatpush1.msra.mxu0 %v1946
        %1985 = vmatprep.subr.mxu0 0.0
        %1986 = vmatpush1.msra.mxu0 %v1947
        %1987 = vmatprep.subr.mxu0 0.0
        %1988 = vmatpush1.msra.mxu0 0.0
        %1989 = vmatprep.subr.mxu0 0.0
        %1990 = vmatpush1.msra.mxu0 0.0
        %1991 = vmatprep.subr.mxu0 0.0
        %1992 = vmatpush1.msra.mxu0 0.0
        %1993 = vmatprep.subr.mxu0 0.0
        %1994 = vmatpush1.msra.mxu0 0.0
        %1995 = vmatprep.subr.mxu0 0.0
        %1996 = vmatpush1.msra.mxu0 0.0
        %1997 = vmatprep.subr.mxu0 0.0
        %1998 = vmatpush1.msra.mxu0 0.0
        %1999 = vmatprep.subr.mxu0 0.0
        %2000 = vmatpush1.msra.mxu0 0.0
        %2001 = vmatprep.subr.mxu0 0.0
        %2002 = vmatpush1.msra.mxu0 0.0
        %2003 = vmatprep.subr.mxu0 0.0
        %2004 = vmatpush1.msra.mxu0 0.0
        %2005 = vmatprep.subr.mxu0 0.0
        %2006 = vmatpush1.msra.mxu0 0.0
        %2007 = vmatprep.subr.mxu0 0.0
        %2008 = vmatpush1.msra.mxu0 0.0
        %2009 = vmatprep.subr.mxu0 0.0
        %2010 = vmatpush1.msra.mxu0 0.0
        %2011 = vmatprep.subr.mxu0 0.0
        %2012 = vmatpush1.msra.mxu0 0.0
        %2013 = vmatprep.subr.mxu0 0.0
        %2014 = vmatpush1.msra.mxu0 0.0
        %2015 = vmatprep.subr.mxu0 0.0
        %2016 = vmatpush1.msra.mxu0 0.0
        %2017 = vmatprep.subr.mxu0 0.0
        %2018 = vmatpush1.msra.mxu0 0.0
        %2019 = vmatprep.mubr.f32.mxu0 0.0
        %2020 = vmatmul.mubr.f32.gmra.mrb[0].mxu0 %v1931
        %v2021 = vpop.f32.mrb[0].mxu0
        %v2022 = vadd.f32 %v1953, %v2021
        %v2023 = vpop.f32.mrb[0].mxu0
        %2024 = vdwg.mxu0
        %v2025 = vadd.f32 %v1809, %v2022
        %2026 = vst.msk [vmem:[#allocation2] sm:$0xff] %vm690, %v2025
        %p2027 = scmp.eq.s32.totalorder %s28, 1
        // Predicated region
        $region89: #{stateful_zenz_forward.1} parent=83 // pred_check
          %p2028 = pneg %p2027
        $region90: #{stateful_zenz_forward.1} parent=83 // pred_check_branch
          %2030 = sbr.rel (%p2028) target = $region92
        $region91: #{stateful_zenz_forward.1} parent=83 // pred_region
          %v2031 = vld [vmem:[%s13] sm:$0x1]
          %v2032 = vld [vmem:[%s14] sm:$0x1]
          %v2033 = vsel %vm690, %v2025, 0.0
          %2034 = vadd.xlane.f32.xlu0 %v2033
          %v2035 = vpop.xlane.xlu0 %2034
          %v2036 = vmul.f32 %v2035, %v694
          %v2037 = vsub.f32 %v2025, %v2036
          %v2038 = vmul.f32 %v2037, %v2037
          %v2039 = vsel %vm690, %v2038, 0.0
          %2040 = vadd.xlane.f32.xlu0 %v2039
          %v2041 = vpop.xlane.xlu0 %2040
          %v2042 = vmul.f32 %v2041, %v694
          %v2043 = vadd.f32 %v2042, 1e-05
          %v2044 = vrsqrt.pop %v2043
          %v2045 = vmul.f32 %v2037, %v2044
          %v2047 = vlaneseq
          %v2048 = vshrl.u32 %v2047, 7
          %v2049 = vsub.s32 0, %v2048
          %v2050 = vrot.slane %v2031, %v2049
          %v2052 = vmul.f32 %v2045, %v2050
          %v2054 = vlaneseq
          %v2055 = vshrl.u32 %v2054, 7
          %v2056 = vsub.s32 0, %v2055
          %v2057 = vrot.slane %v2032, %v2056
          %v2059 = vadd.f32 %v2052, %v2057
          %v2060 = vld [vmem:[%s15] sm:$0xff]
          %v2061 = vld [vmem:[%s15 + $0x8] sm:$0xff]
          %v2062 = vld [vmem:[%s15 + $0x10] sm:$0xff]
          %v2063 = vld [vmem:[%s15 + $0x18] sm:$0xff]
          %v2064 = vld [vmem:[%s15 + $0x20] sm:$0xff]
          %v2065 = vld [vmem:[%s15 + $0x28] sm:$0xff]
          %v2066 = vld [vmem:[%s15 + $0x30] sm:$0xff]
          %v2067 = vld [vmem:[%s15 + $0x38] sm:$0xff]
          %v2069 = vsel %vm690, %v2059, 0
          %v2072 = vsel %vm690, %v2060, 0
          %v2075 = vsel %vm690, %v2061, 0
          %v2078 = vsel %vm690, %v2062, 0
          %v2081 = vsel %vm690, %v2063, 0
          %v2084 = vsel %vm690, %v2064, 0
          %v2087 = vsel %vm690, %v2065, 0
          %v2090 = vsel %vm690, %v2066, 0
          %v2093 = vsel %vm690, %v2067, 0
          %2095 = vmatprep.subr.mxu0 0.0
          %2096 = vmatpush1.xpose.msra.mxu0 %v2072
          %2097 = vmatprep.subr.mxu0 0.0
          %2098 = vmatpush1.xpose.msra.mxu0 %v2075
          %2099 = vmatprep.subr.mxu0 0.0
          %2100 = vmatpush1.xpose.msra.mxu0 %v2078
          %2101 = vmatprep.subr.mxu0 0.0
          %2102 = vmatpush1.xpose.msra.mxu0 %v2081
          %2103 = vmatprep.subr.mxu0 0.0
          %2104 = vmatpush1.xpose.msra.mxu0 %v2084
          %2105 = vmatprep.subr.mxu0 0.0
          %2106 = vmatpush1.xpose.msra.mxu0 %v2087
          %2107 = vmatprep.subr.mxu0 0.0
          %2108 = vmatpush1.xpose.msra.mxu0 %v2090
          %2109 = vmatprep.subr.mxu0 0.0
          %2110 = vmatpush1.xpose.msra.mxu0 %v2093
          %2111 = vmatprep.subr.mxu0 0.0
          %2112 = vmatpush1.xpose.msra.mxu0 0.0
          %2113 = vmatprep.subr.mxu0 0.0
          %2114 = vmatpush1.xpose.msra.mxu0 0.0
          %2115 = vmatprep.subr.mxu0 0.0
          %2116 = vmatpush1.xpose.msra.mxu0 0.0
          %2117 = vmatprep.subr.mxu0 0.0
          %2118 = vmatpush1.xpose.msra.mxu0 0.0
          %2119 = vmatprep.subr.mxu0 0.0
          %2120 = vmatpush1.xpose.msra.mxu0 0.0
          %2121 = vmatprep.subr.mxu0 0.0
          %2122 = vmatpush1.xpose.msra.mxu0 0.0
          %2123 = vmatprep.subr.mxu0 0.0
          %2124 = vmatpush1.xpose.msra.mxu0 0.0
          %2125 = vmatprep.subr.mxu0 0.0
          %2126 = vmatpush1.xpose.msra.mxu0 0.0
          %2127 = vmatprep.subr.mxu0 0.0
          %2128 = vmatpush1.xpose.msra.mxu0 0.0
          %2129 = vmatprep.subr.mxu0 0.0
          %2130 = vmatpush1.xpose.msra.mxu0 0.0
          %2131 = vmatprep.subr.mxu0 0.0
          %2132 = vmatpush1.xpose.msra.mxu0 0.0
          %2133 = vmatprep.subr.mxu0 0.0
          %2134 = vmatpush1.xpose.msra.mxu0 0.0
          %2135 = vmatprep.subr.mxu0 0.0
          %2136 = vmatpush1.xpose.msra.mxu0 0.0
          %2137 = vmatprep.subr.mxu0 0.0
          %2138 = vmatpush1.xpose.msra.mxu0 0.0
          %2139 = vmatprep.subr.mxu0 0.0
          %2140 = vmatpush1.xpose.msra.mxu0 0.0
          %2141 = vmatprep.subr.mxu0 0.0
          %2142 = vmatpush1.xpose.msra.mxu0 0.0
          %2143 = vmatprep.subr.mxu0 0.0
          %2144 = vmatpush1.xpose.msra.mxu0 0.0
          %2145 = vmatprep.subr.mxu0 0.0
          %2146 = vmatpush1.xpose.msra.mxu0 0.0
          %2147 = vmatprep.subr.mxu0 0.0
          %2148 = vmatpush1.xpose.msra.mxu0 0.0
          %2149 = vmatprep.subr.mxu0 0.0
          %2150 = vmatpush1.xpose.msra.mxu0 0.0
          %2151 = vmatprep.subr.mxu0 0.0
          %2152 = vmatpush1.xpose.msra.mxu0 0.0
          %2153 = vmatprep.subr.mxu0 0.0
          %2154 = vmatpush1.xpose.msra.mxu0 0.0
          %2155 = vmatprep.subr.mxu0 0.0
          %2156 = vmatpush1.xpose.msra.mxu0 0.0
          %2157 = vmatprep.subr.mxu0 0.0
          %2158 = vmatpush1.xpose.msra.mxu0 0.0
          %2159 = vmatprep.mubr.f32.mxu0 0.0
          %2160 = vmatmul.mubr.f32.gmra.mrb[0].mxu0 %v2069
          %v2161 = vpop.f32.mrb[0].mxu0
          %v2162 = vadd.f32 0.0, %v2161
          %v2163 = vpop.f32.mrb[0].mxu0
          %2164 = vdwg.mxu0
          %vm2165 = vcmask 523264
          %2166 = vst.msk [vmem:[#allocation3] sm:$0xff] %vm2165, %v2162
        $region92: #{stateful_zenz_forward.1} parent=83 // pred_fallthru
          _
        // Predicated region
        $region93: #{stateful_zenz_forward.1} parent=83 // pred_check
          %p2167 = pneg %p437
        $region94: #{stateful_zenz_forward.1} parent=83 // pred_check_branch
          %2169 = sbr.rel (%p2167) target = $region96
        $region95: #{stateful_zenz_forward.1} parent=83 // pred_region
          %s2171 = ssub.s32 128, 128
          %2172 = vsyncadd [#allocation4], %s2171
          %s2174 = sshll.u32 [#allocation3], 4
          %s2175 = int_to_ptr.vmem [resolvable:$true] %s2174
          %2177 = dma.vmem_to_hbm [thread:$0]  %s2175, 128, %s16, [#allocation4]
        $region96: #{stateful_zenz_forward.1} parent=83 // pred_fallthru
          _
        // Predicated region
        $region97: #{stateful_zenz_forward.1} parent=83 // pred_check
          %p2178 = pneg %p437
        $region98: #{stateful_zenz_forward.1} parent=83 // pred_check_branch
          %2180 = sbr.rel (%p2178) target = $region100
        $region99: #{stateful_zenz_forward.1} parent=83 // pred_region
          %2181 = dma.done [#allocation4], 128
        $region100: #{stateful_zenz_forward.1} parent=83 // pred_fallthru
          _
      $region84: #{stateful_zenz_forward.1} parent=5 // pred_fallthru
        _
      %p2182 = scmp.le.s32.totalorder 2, %s23
      // Predicated region
      $region101: #{stateful_zenz_forward.1} parent=5 // pred_check
        %p2183 = pneg %p2182
      $region102: #{stateful_zenz_forward.1} parent=5 // pred_check_branch
        %2185 = sbr.rel (%p2183) target = $region104
      $region103: #{stateful_zenz_forward.1} parent=5 // pred_region
        %s2186 = ssub.s32 %s23, 2
      $region104: #{stateful_zenz_forward.1} parent=5 // pred_fallthru
        _
    $region6: #{stateful_zenz_forward.1} parent=1 // loop_footer
      %s27 = sadd.s32 1, %s23
    $region7: #{stateful_zenz_forward.1} parent=1 // loop_footer_branch
      %22 = sbr.rel target = $region3
    $region8: #{stateful_zenz_forward.1} parent=1 // loop_exit
      _
    %2187 = vsyncpa [#allocation4], 1
    %s2188 = scalar_lea.sflag [#allocation4], 1
    %2189 = vsyncpa %s2188, 1

</llo_original>
